<compile_context>
chip_gen: v7x
topology: tpu7x:2x2x1
jax: 0.10.0
libtpu: 0.0.40
codegen_flags: <defaults>
</compile_context>

<pallas_src>
import functools

import jax
import jax.numpy as jnp
from jax import lax
from jax.experimental import pallas as pl
from jax.experimental.pallas import tpu as pltpu

NUM_ITERS = 30  # fixed-point solver iteration count (solver **kwargs)


def _deq_fixed_point_kernel(w_ref, b_ref, x_ref, o_ref, *, num_iters, n_channels):
    """One column-tile of the DEQ fixed-point solve (sublane-packed layout).

    w_ref: SMEM [C, C]          cell weight  (scalar reads)
    b_ref: SMEM [C]             cell bias    (scalar reads)
    x_ref: VMEM [C, 8, TN]      input injection tile (per-channel [8, TN] slab)
    o_ref: VMEM [C, 8, TN]      fixed point z*
    """
    C = n_channels

    # Hoist the W scalars and the input injection (x + b) out of the loop.
    # w[c][j] corresponds to W[c, j] in the row-major z @ W convention.
    w = [[w_ref[c, j] for j in range(C)] for c in range(C)]
    xb = tuple(x_ref[c].astype(jnp.float32) + b_ref[c] for c in range(C))

    # init_point = zeros_like(x)
    z0 = tuple(jnp.zeros_like(xb[c]) for c in range(C))

    def body(_, z):
        # f(z, x)[j] = tanh(sum_c W[c, j] * z[c] + b[j] + x[j])
        # CxC contraction as scalar-broadcast mul/adds on the VPU; tanh on the
        # EUP.  Products are tree-reduced to shorten the dependent-add chain
        # that is serialized num_iters times (no f32 FMA on v5e/v6e).
        new = []
        for j in range(C):
            terms = [w[c][j] * z[c] for c in range(C)]
            terms.append(xb[j])
            while len(terms) > 1:
                nxt = [terms[k] + terms[k + 1] for k in range(0, len(terms) - 1, 2)]
                if len(terms) % 2:
                    nxt.append(terms[-1])
                terms = nxt
            new.append(jnp.tanh(terms[0]))
        return tuple(new)

    z_star = lax.fori_loop(0, num_iters, body, z0, unroll=True)

    for c in range(C):
        o_ref[c] = z_star[c].astype(o_ref.dtype)
    # TODO(synk): self.forward_res (per-iteration residual history kept as
    # module state under torch.no_grad) and any tolerance-based early exit of
    # the injected solver are not materialized here (fixed NUM_ITERS steps).


def deq_fixed_point_forward(x_nchw, w, b, *, num_iters=NUM_ITERS, tile_cols=None):
    """Pallas-backed forward of DEQFixedPointTest.

    x_nchw: [B, C, H, W]; w: [C, C]; b: [C].
    tile_cols: packed lane-tile width (multiple of 128).  None -> auto:
      a single grid step at small sizes (best on single-TC v5e/v6e); at large
      sizes an even number of big (<=8192-column) tiles so the "parallel" grid
      axis shards evenly across the two v7x TensorCores.  A [C, 8, tile_cols]
      f32 tile is only tile_cols * C * 32 bytes, so VMEM is never the limit.
    """
    B, C, H, W = x_nchw.shape
    N = B * H * W

    # Auto tile sizing on the sublane-packed column count.
    n_cols_min = pl.cdiv(N, 8)                       # packed cols before padding
    n_cols_128 = 128 * pl.cdiv(n_cols_min, 128)      # padded to lane multiple
    if tile_cols is None:
        if n_cols_128 <= 2048:
            tile_cols = n_cols_128                   # grid=(1,)
        else:
            n_tiles = 2 * pl.cdiv(n_cols_128, 2 * 8192)   # even #tiles for v7x
            tile_cols = 128 * pl.cdiv(pl.cdiv(n_cols_128, n_tiles), 128)
    assert tile_cols % 128 == 0, "tile_cols must be a multiple of 128"

    # NCHW -> [C, N]: channels leading, pixels flattened.
    x_cn = jnp.transpose(x_nchw, (1, 0, 2, 3)).reshape(C, N)

    # Sublane-pack: pad N so each channel folds into [8, n_cols] with n_cols a
    # multiple of tile_cols.  Padding is sliced off afterwards.
    n_cols = tile_cols * pl.cdiv(n_cols_min, tile_cols)
    n_total = 8 * n_cols
    if n_total != N:
        x_cn = jnp.pad(x_cn, ((0, 0), (0, n_total - N)))
    x_packed = x_cn.reshape(C, 8, n_cols)
    grid = (n_cols // tile_cols,)

    kernel = functools.partial(
        _deq_fixed_point_kernel, num_iters=num_iters, n_channels=C
    )

    z_packed = pl.pallas_call(
        kernel,
        out_shape=jax.ShapeDtypeStruct((C, 8, n_cols), x_packed.dtype),
        grid_spec=pltpu.PrefetchScalarGridSpec(
            num_scalar_prefetch=0,
            grid=grid,
            in_specs=[
                # W and b live in SMEM (tiny; read as scalars in the kernel).
                pl.BlockSpec(memory_space=pltpu.MemorySpace.SMEM),
                pl.BlockSpec(memory_space=pltpu.MemorySpace.SMEM),
                # x tile: full channel + sublane dims, lane-dense column tile.
                pl.BlockSpec((C, 8, tile_cols), lambda i: (0, 0, i)),
            ],
            out_specs=pl.BlockSpec((C, 8, tile_cols), lambda i: (0, 0, i)),
        ),
        compiler_params=pltpu.CompilerParams(
            dimension_semantics=("parallel",),
        ),
    )(w, b, x_packed)

    # [C, 8, n_cols] -> [C, N] -> NCHW
    z_cn = z_packed.reshape(C, n_total)[:, :N]
    return z_cn.reshape(C, B, H, W).transpose(1, 0, 2, 3)


def _reference_forward(x_nchw, w, b, *, num_iters=NUM_ITERS):
    """Pure-JAX reference of the same (f, solver) instantiation."""
    B, C, H, W = x_nchw.shape
    x_rows = jnp.transpose(x_nchw, (0, 2, 3, 1)).reshape(B * H * W, C)
    z = jnp.zeros_like(x_rows)
    for _ in range(num_iters):
        z = jnp.tanh(z @ w + b[None, :] + x_rows)
    return z.reshape(B, H, W, C).transpose(0, 3, 1, 2)


if __name__ == "__main__":
    key = jax.random.PRNGKey(0)
    k_x, k_w, k_b = jax.random.split(key, 3)

    B, C, H, W = 2, 4, 16, 16
    x = jax.random.normal(k_x, (B, C, H, W), dtype=jnp.float32)

    # Deterministic parameters for the DEQ cell f.  Small spectral scale so the
    # iteration is a contraction (fixed point exists & iteration converges).
    w = 0.3 * jax.random.normal(k_w, (C, C), dtype=jnp.float32) / jnp.sqrt(C)
    b = 0.1 * jax.random.normal(k_b, (C,), dtype=jnp.float32)

    z = deq_fixed_point_forward(x, w, b)
    z = jax.block_until_ready(z)

    z_ref = _reference_forward(x, w, b)
    assert z.shape == x.shape and z.dtype == x.dtype
    assert jnp.allclose(z, z_ref, atol=1e-5, rtol=1e-5), "mismatch vs JAX reference"

    print("KERNEL_OK")
</pallas_src>

<mosaic_0001>
module attributes {stable_mosaic.version = 11 : i64} {
  func.func @_deq_fixed_point_kernel(%arg0: i32, %arg1: memref<4x4xf32, #tpu.memory_space<smem>>, %arg2: memref<4xf32, #tpu.memory_space<smem>>, %arg3: memref<4x8x128xf32, #tpu.memory_space<vmem>>, %arg4: memref<4x8x128xf32, #tpu.memory_space<vmem>>) attributes {dimension_semantics = [#tpu.dimension_semantics<parallel>], iteration_bounds = array<i64: 1>, scalar_prefetch = 0 : i64, scratch_operands = 0 : i64, tpu.core_type = #tpu.core_type<tc>, window_params = [{transform_indices = @transform_0, window_bounds = array<i64: 4, 4>}, {transform_indices = @transform_1, window_bounds = array<i64: 4>}, {transform_indices = @transform_2, window_bounds = array<i64: 4, 8, 128>}, {transform_indices = @transform_3, window_bounds = array<i64: 4, 8, 128>}]} {
    %c0 = arith.constant 0 : index
    %c0_0 = arith.constant 0 : index
    %0 = memref.load %arg1[%c0, %c0_0] : memref<4x4xf32, #tpu.memory_space<smem>>
    %c0_1 = arith.constant 0 : index
    %c1 = arith.constant 1 : index
    %1 = memref.load %arg1[%c0_1, %c1] : memref<4x4xf32, #tpu.memory_space<smem>>
    %c0_2 = arith.constant 0 : index
    %c2 = arith.constant 2 : index
    %2 = memref.load %arg1[%c0_2, %c2] : memref<4x4xf32, #tpu.memory_space<smem>>
    %c0_3 = arith.constant 0 : index
    %c3 = arith.constant 3 : index
    %3 = memref.load %arg1[%c0_3, %c3] : memref<4x4xf32, #tpu.memory_space<smem>>
    %c1_4 = arith.constant 1 : index
    %c0_5 = arith.constant 0 : index
    %4 = memref.load %arg1[%c1_4, %c0_5] : memref<4x4xf32, #tpu.memory_space<smem>>
    %c1_6 = arith.constant 1 : index
    %c1_7 = arith.constant 1 : index
    %5 = memref.load %arg1[%c1_6, %c1_7] : memref<4x4xf32, #tpu.memory_space<smem>>
    %c1_8 = arith.constant 1 : index
    %c2_9 = arith.constant 2 : index
    %6 = memref.load %arg1[%c1_8, %c2_9] : memref<4x4xf32, #tpu.memory_space<smem>>
    %c1_10 = arith.constant 1 : index
    %c3_11 = arith.constant 3 : index
    %7 = memref.load %arg1[%c1_10, %c3_11] : memref<4x4xf32, #tpu.memory_space<smem>>
    %c2_12 = arith.constant 2 : index
    %c0_13 = arith.constant 0 : index
    %8 = memref.load %arg1[%c2_12, %c0_13] : memref<4x4xf32, #tpu.memory_space<smem>>
    %c2_14 = arith.constant 2 : index
    %c1_15 = arith.constant 1 : index
    %9 = memref.load %arg1[%c2_14, %c1_15] : memref<4x4xf32, #tpu.memory_space<smem>>
    %c2_16 = arith.constant 2 : index
    %c2_17 = arith.constant 2 : index
    %10 = memref.load %arg1[%c2_16, %c2_17] : memref<4x4xf32, #tpu.memory_space<smem>>
    %c2_18 = arith.constant 2 : index
    %c3_19 = arith.constant 3 : index
    %11 = memref.load %arg1[%c2_18, %c3_19] : memref<4x4xf32, #tpu.memory_space<smem>>
    %c3_20 = arith.constant 3 : index
    %c0_21 = arith.constant 0 : index
    %12 = memref.load %arg1[%c3_20, %c0_21] : memref<4x4xf32, #tpu.memory_space<smem>>
    %c3_22 = arith.constant 3 : index
    %c1_23 = arith.constant 1 : index
    %13 = memref.load %arg1[%c3_22, %c1_23] : memref<4x4xf32, #tpu.memory_space<smem>>
    %c3_24 = arith.constant 3 : index
    %c2_25 = arith.constant 2 : index
    %14 = memref.load %arg1[%c3_24, %c2_25] : memref<4x4xf32, #tpu.memory_space<smem>>
    %c3_26 = arith.constant 3 : index
    %c3_27 = arith.constant 3 : index
    %15 = memref.load %arg1[%c3_26, %c3_27] : memref<4x4xf32, #tpu.memory_space<smem>>
    %c0_28 = arith.constant 0 : index
    %c0_29 = arith.constant 0 : index
    %c0_30 = arith.constant 0 : index
    %16 = vector.load %arg3[%c0_28, %c0_29, %c0_30] : memref<4x8x128xf32, #tpu.memory_space<vmem>>, vector<1x8x128xf32>
    %17 = vector.shape_cast %16 : vector<1x8x128xf32> to vector<8x128xf32>
    %c0_31 = arith.constant 0 : index
    %18 = memref.load %arg2[%c0_31] : memref<4xf32, #tpu.memory_space<smem>>
    %19 = vector.broadcast %18 : f32 to vector<8x128xf32>
    %20 = arith.addf %17, %19 : vector<8x128xf32>
    %c1_32 = arith.constant 1 : index
    %c0_33 = arith.constant 0 : index
    %c0_34 = arith.constant 0 : index
    %21 = vector.load %arg3[%c1_32, %c0_33, %c0_34] : memref<4x8x128xf32, #tpu.memory_space<vmem>>, vector<1x8x128xf32>
    %22 = vector.shape_cast %21 : vector<1x8x128xf32> to vector<8x128xf32>
    %c1_35 = arith.constant 1 : index
    %23 = memref.load %arg2[%c1_35] : memref<4xf32, #tpu.memory_space<smem>>
    %24 = vector.broadcast %23 : f32 to vector<8x128xf32>
    %25 = arith.addf %22, %24 : vector<8x128xf32>
    %c2_36 = arith.constant 2 : index
    %c0_37 = arith.constant 0 : index
    %c0_38 = arith.constant 0 : index
    %26 = vector.load %arg3[%c2_36, %c0_37, %c0_38] : memref<4x8x128xf32, #tpu.memory_space<vmem>>, vector<1x8x128xf32>
    %27 = vector.shape_cast %26 : vector<1x8x128xf32> to vector<8x128xf32>
    %c2_39 = arith.constant 2 : index
    %28 = memref.load %arg2[%c2_39] : memref<4xf32, #tpu.memory_space<smem>>
    %29 = vector.broadcast %28 : f32 to vector<8x128xf32>
    %30 = arith.addf %27, %29 : vector<8x128xf32>
    %c3_40 = arith.constant 3 : index
    %c0_41 = arith.constant 0 : index
    %c0_42 = arith.constant 0 : index
    %31 = vector.load %arg3[%c3_40, %c0_41, %c0_42] : memref<4x8x128xf32, #tpu.memory_space<vmem>>, vector<1x8x128xf32>
    %32 = vector.shape_cast %31 : vector<1x8x128xf32> to vector<8x128xf32>
    %c3_43 = arith.constant 3 : index
    %33 = memref.load %arg2[%c3_43] : memref<4xf32, #tpu.memory_space<smem>>
    %34 = vector.broadcast %33 : f32 to vector<8x128xf32>
    %35 = arith.addf %32, %34 : vector<8x128xf32>
    %cst = arith.constant 0.000000e+00 : f32
    %36 = vector.broadcast %cst : f32 to vector<8x128xf32>
    %cst_44 = arith.constant 0.000000e+00 : f32
    %37 = vector.broadcast %cst_44 : f32 to vector<8x128xf32>
    %cst_45 = arith.constant 0.000000e+00 : f32
    %38 = vector.broadcast %cst_45 : f32 to vector<8x128xf32>
    %cst_46 = arith.constant 0.000000e+00 : f32
    %39 = vector.broadcast %cst_46 : f32 to vector<8x128xf32>
    %c0_i32 = arith.constant 0 : i32
    %40 = vector.broadcast %0 : f32 to vector<8x128xf32>
    %41 = arith.mulf %40, %36 : vector<8x128xf32>
    %42 = vector.broadcast %4 : f32 to vector<8x128xf32>
    %43 = arith.mulf %42, %37 : vector<8x128xf32>
    %44 = vector.broadcast %8 : f32 to vector<8x128xf32>
    %45 = arith.mulf %44, %38 : vector<8x128xf32>
    %46 = vector.broadcast %12 : f32 to vector<8x128xf32>
    %47 = arith.mulf %46, %39 : vector<8x128xf32>
    %48 = arith.addf %41, %43 : vector<8x128xf32>
    %49 = arith.addf %45, %47 : vector<8x128xf32>
    %50 = arith.addf %48, %49 : vector<8x128xf32>
    %51 = arith.addf %50, %20 : vector<8x128xf32>
    %52 = math.tanh %51 : vector<8x128xf32>
    %53 = vector.broadcast %1 : f32 to vector<8x128xf32>
    %54 = arith.mulf %53, %36 : vector<8x128xf32>
    %55 = vector.broadcast %5 : f32 to vector<8x128xf32>
    %56 = arith.mulf %55, %37 : vector<8x128xf32>
    %57 = vector.broadcast %9 : f32 to vector<8x128xf32>
    %58 = arith.mulf %57, %38 : vector<8x128xf32>
    %59 = vector.broadcast %13 : f32 to vector<8x128xf32>
    %60 = arith.mulf %59, %39 : vector<8x128xf32>
    %61 = arith.addf %54, %56 : vector<8x128xf32>
    %62 = arith.addf %58, %60 : vector<8x128xf32>
    %63 = arith.addf %61, %62 : vector<8x128xf32>
    %64 = arith.addf %63, %25 : vector<8x128xf32>
    %65 = math.tanh %64 : vector<8x128xf32>
    %66 = vector.broadcast %2 : f32 to vector<8x128xf32>
    %67 = arith.mulf %66, %36 : vector<8x128xf32>
    %68 = vector.broadcast %6 : f32 to vector<8x128xf32>
    %69 = arith.mulf %68, %37 : vector<8x128xf32>
    %70 = vector.broadcast %10 : f32 to vector<8x128xf32>
    %71 = arith.mulf %70, %38 : vector<8x128xf32>
    %72 = vector.broadcast %14 : f32 to vector<8x128xf32>
    %73 = arith.mulf %72, %39 : vector<8x128xf32>
    %74 = arith.addf %67, %69 : vector<8x128xf32>
    %75 = arith.addf %71, %73 : vector<8x128xf32>
    %76 = arith.addf %74, %75 : vector<8x128xf32>
    %77 = arith.addf %76, %30 : vector<8x128xf32>
    %78 = math.tanh %77 : vector<8x128xf32>
    %79 = vector.broadcast %3 : f32 to vector<8x128xf32>
    %80 = arith.mulf %79, %36 : vector<8x128xf32>
    %81 = vector.broadcast %7 : f32 to vector<8x128xf32>
    %82 = arith.mulf %81, %37 : vector<8x128xf32>
    %83 = vector.broadcast %11 : f32 to vector<8x128xf32>
    %84 = arith.mulf %83, %38 : vector<8x128xf32>
    %85 = vector.broadcast %15 : f32 to vector<8x128xf32>
    %86 = arith.mulf %85, %39 : vector<8x128xf32>
    %87 = arith.addf %80, %82 : vector<8x128xf32>
    %88 = arith.addf %84, %86 : vector<8x128xf32>
    %89 = arith.addf %87, %88 : vector<8x128xf32>
    %90 = arith.addf %89, %35 : vector<8x128xf32>
    %91 = math.tanh %90 : vector<8x128xf32>
    %c1_i32 = arith.constant 1 : i32
    %92 = vector.broadcast %0 : f32 to vector<8x128xf32>
    %93 = arith.mulf %92, %52 : vector<8x128xf32>
    %94 = vector.broadcast %4 : f32 to vector<8x128xf32>
    %95 = arith.mulf %94, %65 : vector<8x128xf32>
    %96 = vector.broadcast %8 : f32 to vector<8x128xf32>
    %97 = arith.mulf %96, %78 : vector<8x128xf32>
    %98 = vector.broadcast %12 : f32 to vector<8x128xf32>
    %99 = arith.mulf %98, %91 : vector<8x128xf32>
    %100 = arith.addf %93, %95 : vector<8x128xf32>
    %101 = arith.addf %97, %99 : vector<8x128xf32>
    %102 = arith.addf %100, %101 : vector<8x128xf32>
    %103 = arith.addf %102, %20 : vector<8x128xf32>
    %104 = math.tanh %103 : vector<8x128xf32>
    %105 = vector.broadcast %1 : f32 to vector<8x128xf32>
    %106 = arith.mulf %105, %52 : vector<8x128xf32>
    %107 = vector.broadcast %5 : f32 to vector<8x128xf32>
    %108 = arith.mulf %107, %65 : vector<8x128xf32>
    %109 = vector.broadcast %9 : f32 to vector<8x128xf32>
    %110 = arith.mulf %109, %78 : vector<8x128xf32>
    %111 = vector.broadcast %13 : f32 to vector<8x128xf32>
    %112 = arith.mulf %111, %91 : vector<8x128xf32>
    %113 = arith.addf %106, %108 : vector<8x128xf32>
    %114 = arith.addf %110, %112 : vector<8x128xf32>
    %115 = arith.addf %113, %114 : vector<8x128xf32>
    %116 = arith.addf %115, %25 : vector<8x128xf32>
    %117 = math.tanh %116 : vector<8x128xf32>
    %118 = vector.broadcast %2 : f32 to vector<8x128xf32>
    %119 = arith.mulf %118, %52 : vector<8x128xf32>
    %120 = vector.broadcast %6 : f32 to vector<8x128xf32>
    %121 = arith.mulf %120, %65 : vector<8x128xf32>
    %122 = vector.broadcast %10 : f32 to vector<8x128xf32>
    %123 = arith.mulf %122, %78 : vector<8x128xf32>
    %124 = vector.broadcast %14 : f32 to vector<8x128xf32>
    %125 = arith.mulf %124, %91 : vector<8x128xf32>
    %126 = arith.addf %119, %121 : vector<8x128xf32>
    %127 = arith.addf %123, %125 : vector<8x128xf32>
    %128 = arith.addf %126, %127 : vector<8x128xf32>
    %129 = arith.addf %128, %30 : vector<8x128xf32>
    %130 = math.tanh %129 : vector<8x128xf32>
    %131 = vector.broadcast %3 : f32 to vector<8x128xf32>
    %132 = arith.mulf %131, %52 : vector<8x128xf32>
    %133 = vector.broadcast %7 : f32 to vector<8x128xf32>
    %134 = arith.mulf %133, %65 : vector<8x128xf32>
    %135 = vector.broadcast %11 : f32 to vector<8x128xf32>
    %136 = arith.mulf %135, %78 : vector<8x128xf32>
    %137 = vector.broadcast %15 : f32 to vector<8x128xf32>
    %138 = arith.mulf %137, %91 : vector<8x128xf32>
    %139 = arith.addf %132, %134 : vector<8x128xf32>
    %140 = arith.addf %136, %138 : vector<8x128xf32>
    %141 = arith.addf %139, %140 : vector<8x128xf32>
    %142 = arith.addf %141, %35 : vector<8x128xf32>
    %143 = math.tanh %142 : vector<8x128xf32>
    %c2_i32 = arith.constant 2 : i32
    %144 = vector.broadcast %0 : f32 to vector<8x128xf32>
    %145 = arith.mulf %144, %104 : vector<8x128xf32>
    %146 = vector.broadcast %4 : f32 to vector<8x128xf32>
    %147 = arith.mulf %146, %117 : vector<8x128xf32>
    %148 = vector.broadcast %8 : f32 to vector<8x128xf32>
    %149 = arith.mulf %148, %130 : vector<8x128xf32>
    %150 = vector.broadcast %12 : f32 to vector<8x128xf32>
    %151 = arith.mulf %150, %143 : vector<8x128xf32>
    %152 = arith.addf %145, %147 : vector<8x128xf32>
    %153 = arith.addf %149, %151 : vector<8x128xf32>
    %154 = arith.addf %152, %153 : vector<8x128xf32>
    %155 = arith.addf %154, %20 : vector<8x128xf32>
    %156 = math.tanh %155 : vector<8x128xf32>
    %157 = vector.broadcast %1 : f32 to vector<8x128xf32>
    %158 = arith.mulf %157, %104 : vector<8x128xf32>
    %159 = vector.broadcast %5 : f32 to vector<8x128xf32>
    %160 = arith.mulf %159, %117 : vector<8x128xf32>
    %161 = vector.broadcast %9 : f32 to vector<8x128xf32>
    %162 = arith.mulf %161, %130 : vector<8x128xf32>
    %163 = vector.broadcast %13 : f32 to vector<8x128xf32>
    %164 = arith.mulf %163, %143 : vector<8x128xf32>
    %165 = arith.addf %158, %160 : vector<8x128xf32>
    %166 = arith.addf %162, %164 : vector<8x128xf32>
    %167 = arith.addf %165, %166 : vector<8x128xf32>
    %168 = arith.addf %167, %25 : vector<8x128xf32>
    %169 = math.tanh %168 : vector<8x128xf32>
    %170 = vector.broadcast %2 : f32 to vector<8x128xf32>
    %171 = arith.mulf %170, %104 : vector<8x128xf32>
    %172 = vector.broadcast %6 : f32 to vector<8x128xf32>
    %173 = arith.mulf %172, %117 : vector<8x128xf32>
    %174 = vector.broadcast %10 : f32 to vector<8x128xf32>
    %175 = arith.mulf %174, %130 : vector<8x128xf32>
    %176 = vector.broadcast %14 : f32 to vector<8x128xf32>
    %177 = arith.mulf %176, %143 : vector<8x128xf32>
    %178 = arith.addf %171, %173 : vector<8x128xf32>
    %179 = arith.addf %175, %177 : vector<8x128xf32>
    %180 = arith.addf %178, %179 : vector<8x128xf32>
    %181 = arith.addf %180, %30 : vector<8x128xf32>
    %182 = math.tanh %181 : vector<8x128xf32>
    %183 = vector.broadcast %3 : f32 to vector<8x128xf32>
    %184 = arith.mulf %183, %104 : vector<8x128xf32>
    %185 = vector.broadcast %7 : f32 to vector<8x128xf32>
    %186 = arith.mulf %185, %117 : vector<8x128xf32>
    %187 = vector.broadcast %11 : f32 to vector<8x128xf32>
    %188 = arith.mulf %187, %130 : vector<8x128xf32>
    %189 = vector.broadcast %15 : f32 to vector<8x128xf32>
    %190 = arith.mulf %189, %143 : vector<8x128xf32>
    %191 = arith.addf %184, %186 : vector<8x128xf32>
    %192 = arith.addf %188, %190 : vector<8x128xf32>
    %193 = arith.addf %191, %192 : vector<8x128xf32>
    %194 = arith.addf %193, %35 : vector<8x128xf32>
    %195 = math.tanh %194 : vector<8x128xf32>
    %c3_i32 = arith.constant 3 : i32
    %196 = vector.broadcast %0 : f32 to vector<8x128xf32>
    %197 = arith.mulf %196, %156 : vector<8x128xf32>
    %198 = vector.broadcast %4 : f32 to vector<8x128xf32>
    %199 = arith.mulf %198, %169 : vector<8x128xf32>
    %200 = vector.broadcast %8 : f32 to vector<8x128xf32>
    %201 = arith.mulf %200, %182 : vector<8x128xf32>
    %202 = vector.broadcast %12 : f32 to vector<8x128xf32>
    %203 = arith.mulf %202, %195 : vector<8x128xf32>
    %204 = arith.addf %197, %199 : vector<8x128xf32>
    %205 = arith.addf %201, %203 : vector<8x128xf32>
    %206 = arith.addf %204, %205 : vector<8x128xf32>
    %207 = arith.addf %206, %20 : vector<8x128xf32>
    %208 = math.tanh %207 : vector<8x128xf32>
    %209 = vector.broadcast %1 : f32 to vector<8x128xf32>
    %210 = arith.mulf %209, %156 : vector<8x128xf32>
    %211 = vector.broadcast %5 : f32 to vector<8x128xf32>
    %212 = arith.mulf %211, %169 : vector<8x128xf32>
    %213 = vector.broadcast %9 : f32 to vector<8x128xf32>
    %214 = arith.mulf %213, %182 : vector<8x128xf32>
    %215 = vector.broadcast %13 : f32 to vector<8x128xf32>
    %216 = arith.mulf %215, %195 : vector<8x128xf32>
    %217 = arith.addf %210, %212 : vector<8x128xf32>
    %218 = arith.addf %214, %216 : vector<8x128xf32>
    %219 = arith.addf %217, %218 : vector<8x128xf32>
    %220 = arith.addf %219, %25 : vector<8x128xf32>
    %221 = math.tanh %220 : vector<8x128xf32>
    %222 = vector.broadcast %2 : f32 to vector<8x128xf32>
    %223 = arith.mulf %222, %156 : vector<8x128xf32>
    %224 = vector.broadcast %6 : f32 to vector<8x128xf32>
    %225 = arith.mulf %224, %169 : vector<8x128xf32>
    %226 = vector.broadcast %10 : f32 to vector<8x128xf32>
    %227 = arith.mulf %226, %182 : vector<8x128xf32>
    %228 = vector.broadcast %14 : f32 to vector<8x128xf32>
    %229 = arith.mulf %228, %195 : vector<8x128xf32>
    %230 = arith.addf %223, %225 : vector<8x128xf32>
    %231 = arith.addf %227, %229 : vector<8x128xf32>
    %232 = arith.addf %230, %231 : vector<8x128xf32>
    %233 = arith.addf %232, %30 : vector<8x128xf32>
    %234 = math.tanh %233 : vector<8x128xf32>
    %235 = vector.broadcast %3 : f32 to vector<8x128xf32>
    %236 = arith.mulf %235, %156 : vector<8x128xf32>
    %237 = vector.broadcast %7 : f32 to vector<8x128xf32>
    %238 = arith.mulf %237, %169 : vector<8x128xf32>
    %239 = vector.broadcast %11 : f32 to vector<8x128xf32>
    %240 = arith.mulf %239, %182 : vector<8x128xf32>
    %241 = vector.broadcast %15 : f32 to vector<8x128xf32>
    %242 = arith.mulf %241, %195 : vector<8x128xf32>
    %243 = arith.addf %236, %238 : vector<8x128xf32>
    %244 = arith.addf %240, %242 : vector<8x128xf32>
    %245 = arith.addf %243, %244 : vector<8x128xf32>
    %246 = arith.addf %245, %35 : vector<8x128xf32>
    %247 = math.tanh %246 : vector<8x128xf32>
    %c4_i32 = arith.constant 4 : i32
    %248 = vector.broadcast %0 : f32 to vector<8x128xf32>
    %249 = arith.mulf %248, %208 : vector<8x128xf32>
    %250 = vector.broadcast %4 : f32 to vector<8x128xf32>
    %251 = arith.mulf %250, %221 : vector<8x128xf32>
    %252 = vector.broadcast %8 : f32 to vector<8x128xf32>
    %253 = arith.mulf %252, %234 : vector<8x128xf32>
    %254 = vector.broadcast %12 : f32 to vector<8x128xf32>
    %255 = arith.mulf %254, %247 : vector<8x128xf32>
    %256 = arith.addf %249, %251 : vector<8x128xf32>
    %257 = arith.addf %253, %255 : vector<8x128xf32>
    %258 = arith.addf %256, %257 : vector<8x128xf32>
    %259 = arith.addf %258, %20 : vector<8x128xf32>
    %260 = math.tanh %259 : vector<8x128xf32>
    %261 = vector.broadcast %1 : f32 to vector<8x128xf32>
    %262 = arith.mulf %261, %208 : vector<8x128xf32>
    %263 = vector.broadcast %5 : f32 to vector<8x128xf32>
    %264 = arith.mulf %263, %221 : vector<8x128xf32>
    %265 = vector.broadcast %9 : f32 to vector<8x128xf32>
    %266 = arith.mulf %265, %234 : vector<8x128xf32>
    %267 = vector.broadcast %13 : f32 to vector<8x128xf32>
    %268 = arith.mulf %267, %247 : vector<8x128xf32>
    %269 = arith.addf %262, %264 : vector<8x128xf32>
    %270 = arith.addf %266, %268 : vector<8x128xf32>
    %271 = arith.addf %269, %270 : vector<8x128xf32>
    %272 = arith.addf %271, %25 : vector<8x128xf32>
    %273 = math.tanh %272 : vector<8x128xf32>
    %274 = vector.broadcast %2 : f32 to vector<8x128xf32>
    %275 = arith.mulf %274, %208 : vector<8x128xf32>
    %276 = vector.broadcast %6 : f32 to vector<8x128xf32>
    %277 = arith.mulf %276, %221 : vector<8x128xf32>
    %278 = vector.broadcast %10 : f32 to vector<8x128xf32>
    %279 = arith.mulf %278, %234 : vector<8x128xf32>
    %280 = vector.broadcast %14 : f32 to vector<8x128xf32>
    %281 = arith.mulf %280, %247 : vector<8x128xf32>
    %282 = arith.addf %275, %277 : vector<8x128xf32>
    %283 = arith.addf %279, %281 : vector<8x128xf32>
    %284 = arith.addf %282, %283 : vector<8x128xf32>
    %285 = arith.addf %284, %30 : vector<8x128xf32>
    %286 = math.tanh %285 : vector<8x128xf32>
    %287 = vector.broadcast %3 : f32 to vector<8x128xf32>
    %288 = arith.mulf %287, %208 : vector<8x128xf32>
    %289 = vector.broadcast %7 : f32 to vector<8x128xf32>
    %290 = arith.mulf %289, %221 : vector<8x128xf32>
    %291 = vector.broadcast %11 : f32 to vector<8x128xf32>
    %292 = arith.mulf %291, %234 : vector<8x128xf32>
    %293 = vector.broadcast %15 : f32 to vector<8x128xf32>
    %294 = arith.mulf %293, %247 : vector<8x128xf32>
    %295 = arith.addf %288, %290 : vector<8x128xf32>
    %296 = arith.addf %292, %294 : vector<8x128xf32>
    %297 = arith.addf %295, %296 : vector<8x128xf32>
    %298 = arith.addf %297, %35 : vector<8x128xf32>
    %299 = math.tanh %298 : vector<8x128xf32>
    %c5_i32 = arith.constant 5 : i32
    %300 = vector.broadcast %0 : f32 to vector<8x128xf32>
    %301 = arith.mulf %300, %260 : vector<8x128xf32>
    %302 = vector.broadcast %4 : f32 to vector<8x128xf32>
    %303 = arith.mulf %302, %273 : vector<8x128xf32>
    %304 = vector.broadcast %8 : f32 to vector<8x128xf32>
    %305 = arith.mulf %304, %286 : vector<8x128xf32>
    %306 = vector.broadcast %12 : f32 to vector<8x128xf32>
    %307 = arith.mulf %306, %299 : vector<8x128xf32>
    %308 = arith.addf %301, %303 : vector<8x128xf32>
    %309 = arith.addf %305, %307 : vector<8x128xf32>
    %310 = arith.addf %308, %309 : vector<8x128xf32>
    %311 = arith.addf %310, %20 : vector<8x128xf32>
    %312 = math.tanh %311 : vector<8x128xf32>
    %313 = vector.broadcast %1 : f32 to vector<8x128xf32>
    %314 = arith.mulf %313, %260 : vector<8x128xf32>
    %315 = vector.broadcast %5 : f32 to vector<8x128xf32>
    %316 = arith.mulf %315, %273 : vector<8x128xf32>
    %317 = vector.broadcast %9 : f32 to vector<8x128xf32>
    %318 = arith.mulf %317, %286 : vector<8x128xf32>
    %319 = vector.broadcast %13 : f32 to vector<8x128xf32>
    %320 = arith.mulf %319, %299 : vector<8x128xf32>
    %321 = arith.addf %314, %316 : vector<8x128xf32>
    %322 = arith.addf %318, %320 : vector<8x128xf32>
    %323 = arith.addf %321, %322 : vector<8x128xf32>
    %324 = arith.addf %323, %25 : vector<8x128xf32>
    %325 = math.tanh %324 : vector<8x128xf32>
    %326 = vector.broadcast %2 : f32 to vector<8x128xf32>
    %327 = arith.mulf %326, %260 : vector<8x128xf32>
    %328 = vector.broadcast %6 : f32 to vector<8x128xf32>
    %329 = arith.mulf %328, %273 : vector<8x128xf32>
    %330 = vector.broadcast %10 : f32 to vector<8x128xf32>
    %331 = arith.mulf %330, %286 : vector<8x128xf32>
    %332 = vector.broadcast %14 : f32 to vector<8x128xf32>
    %333 = arith.mulf %332, %299 : vector<8x128xf32>
    %334 = arith.addf %327, %329 : vector<8x128xf32>
    %335 = arith.addf %331, %333 : vector<8x128xf32>
    %336 = arith.addf %334, %335 : vector<8x128xf32>
    %337 = arith.addf %336, %30 : vector<8x128xf32>
    %338 = math.tanh %337 : vector<8x128xf32>
    %339 = vector.broadcast %3 : f32 to vector<8x128xf32>
    %340 = arith.mulf %339, %260 : vector<8x128xf32>
    %341 = vector.broadcast %7 : f32 to vector<8x128xf32>
    %342 = arith.mulf %341, %273 : vector<8x128xf32>
    %343 = vector.broadcast %11 : f32 to vector<8x128xf32>
    %344 = arith.mulf %343, %286 : vector<8x128xf32>
    %345 = vector.broadcast %15 : f32 to vector<8x128xf32>
    %346 = arith.mulf %345, %299 : vector<8x128xf32>
    %347 = arith.addf %340, %342 : vector<8x128xf32>
    %348 = arith.addf %344, %346 : vector<8x128xf32>
    %349 = arith.addf %347, %348 : vector<8x128xf32>
    %350 = arith.addf %349, %35 : vector<8x128xf32>
    %351 = math.tanh %350 : vector<8x128xf32>
    %c6_i32 = arith.constant 6 : i32
    %352 = vector.broadcast %0 : f32 to vector<8x128xf32>
    %353 = arith.mulf %352, %312 : vector<8x128xf32>
    %354 = vector.broadcast %4 : f32 to vector<8x128xf32>
    %355 = arith.mulf %354, %325 : vector<8x128xf32>
    %356 = vector.broadcast %8 : f32 to vector<8x128xf32>
    %357 = arith.mulf %356, %338 : vector<8x128xf32>
    %358 = vector.broadcast %12 : f32 to vector<8x128xf32>
    %359 = arith.mulf %358, %351 : vector<8x128xf32>
    %360 = arith.addf %353, %355 : vector<8x128xf32>
    %361 = arith.addf %357, %359 : vector<8x128xf32>
    %362 = arith.addf %360, %361 : vector<8x128xf32>
    %363 = arith.addf %362, %20 : vector<8x128xf32>
    %364 = math.tanh %363 : vector<8x128xf32>
    %365 = vector.broadcast %1 : f32 to vector<8x128xf32>
    %366 = arith.mulf %365, %312 : vector<8x128xf32>
    %367 = vector.broadcast %5 : f32 to vector<8x128xf32>
    %368 = arith.mulf %367, %325 : vector<8x128xf32>
    %369 = vector.broadcast %9 : f32 to vector<8x128xf32>
    %370 = arith.mulf %369, %338 : vector<8x128xf32>
    %371 = vector.broadcast %13 : f32 to vector<8x128xf32>
    %372 = arith.mulf %371, %351 : vector<8x128xf32>
    %373 = arith.addf %366, %368 : vector<8x128xf32>
    %374 = arith.addf %370, %372 : vector<8x128xf32>
    %375 = arith.addf %373, %374 : vector<8x128xf32>
    %376 = arith.addf %375, %25 : vector<8x128xf32>
    %377 = math.tanh %376 : vector<8x128xf32>
    %378 = vector.broadcast %2 : f32 to vector<8x128xf32>
    %379 = arith.mulf %378, %312 : vector<8x128xf32>
    %380 = vector.broadcast %6 : f32 to vector<8x128xf32>
    %381 = arith.mulf %380, %325 : vector<8x128xf32>
    %382 = vector.broadcast %10 : f32 to vector<8x128xf32>
    %383 = arith.mulf %382, %338 : vector<8x128xf32>
    %384 = vector.broadcast %14 : f32 to vector<8x128xf32>
    %385 = arith.mulf %384, %351 : vector<8x128xf32>
    %386 = arith.addf %379, %381 : vector<8x128xf32>
    %387 = arith.addf %383, %385 : vector<8x128xf32>
    %388 = arith.addf %386, %387 : vector<8x128xf32>
    %389 = arith.addf %388, %30 : vector<8x128xf32>
    %390 = math.tanh %389 : vector<8x128xf32>
    %391 = vector.broadcast %3 : f32 to vector<8x128xf32>
    %392 = arith.mulf %391, %312 : vector<8x128xf32>
    %393 = vector.broadcast %7 : f32 to vector<8x128xf32>
    %394 = arith.mulf %393, %325 : vector<8x128xf32>
    %395 = vector.broadcast %11 : f32 to vector<8x128xf32>
    %396 = arith.mulf %395, %338 : vector<8x128xf32>
    %397 = vector.broadcast %15 : f32 to vector<8x128xf32>
    %398 = arith.mulf %397, %351 : vector<8x128xf32>
    %399 = arith.addf %392, %394 : vector<8x128xf32>
    %400 = arith.addf %396, %398 : vector<8x128xf32>
    %401 = arith.addf %399, %400 : vector<8x128xf32>
    %402 = arith.addf %401, %35 : vector<8x128xf32>
    %403 = math.tanh %402 : vector<8x128xf32>
    %c7_i32 = arith.constant 7 : i32
    %404 = vector.broadcast %0 : f32 to vector<8x128xf32>
    %405 = arith.mulf %404, %364 : vector<8x128xf32>
    %406 = vector.broadcast %4 : f32 to vector<8x128xf32>
    %407 = arith.mulf %406, %377 : vector<8x128xf32>
    %408 = vector.broadcast %8 : f32 to vector<8x128xf32>
    %409 = arith.mulf %408, %390 : vector<8x128xf32>
    %410 = vector.broadcast %12 : f32 to vector<8x128xf32>
    %411 = arith.mulf %410, %403 : vector<8x128xf32>
    %412 = arith.addf %405, %407 : vector<8x128xf32>
    %413 = arith.addf %409, %411 : vector<8x128xf32>
    %414 = arith.addf %412, %413 : vector<8x128xf32>
    %415 = arith.addf %414, %20 : vector<8x128xf32>
    %416 = math.tanh %415 : vector<8x128xf32>
    %417 = vector.broadcast %1 : f32 to vector<8x128xf32>
    %418 = arith.mulf %417, %364 : vector<8x128xf32>
    %419 = vector.broadcast %5 : f32 to vector<8x128xf32>
    %420 = arith.mulf %419, %377 : vector<8x128xf32>
    %421 = vector.broadcast %9 : f32 to vector<8x128xf32>
    %422 = arith.mulf %421, %390 : vector<8x128xf32>
    %423 = vector.broadcast %13 : f32 to vector<8x128xf32>
    %424 = arith.mulf %423, %403 : vector<8x128xf32>
    %425 = arith.addf %418, %420 : vector<8x128xf32>
    %426 = arith.addf %422, %424 : vector<8x128xf32>
    %427 = arith.addf %425, %426 : vector<8x128xf32>
    %428 = arith.addf %427, %25 : vector<8x128xf32>
    %429 = math.tanh %428 : vector<8x128xf32>
    %430 = vector.broadcast %2 : f32 to vector<8x128xf32>
    %431 = arith.mulf %430, %364 : vector<8x128xf32>
    %432 = vector.broadcast %6 : f32 to vector<8x128xf32>
    %433 = arith.mulf %432, %377 : vector<8x128xf32>
    %434 = vector.broadcast %10 : f32 to vector<8x128xf32>
    %435 = arith.mulf %434, %390 : vector<8x128xf32>
    %436 = vector.broadcast %14 : f32 to vector<8x128xf32>
    %437 = arith.mulf %436, %403 : vector<8x128xf32>
    %438 = arith.addf %431, %433 : vector<8x128xf32>
    %439 = arith.addf %435, %437 : vector<8x128xf32>
    %440 = arith.addf %438, %439 : vector<8x128xf32>
    %441 = arith.addf %440, %30 : vector<8x128xf32>
    %442 = math.tanh %441 : vector<8x128xf32>
    %443 = vector.broadcast %3 : f32 to vector<8x128xf32>
    %444 = arith.mulf %443, %364 : vector<8x128xf32>
    %445 = vector.broadcast %7 : f32 to vector<8x128xf32>
    %446 = arith.mulf %445, %377 : vector<8x128xf32>
    %447 = vector.broadcast %11 : f32 to vector<8x128xf32>
    %448 = arith.mulf %447, %390 : vector<8x128xf32>
    %449 = vector.broadcast %15 : f32 to vector<8x128xf32>
    %450 = arith.mulf %449, %403 : vector<8x128xf32>
    %451 = arith.addf %444, %446 : vector<8x128xf32>
    %452 = arith.addf %448, %450 : vector<8x128xf32>
    %453 = arith.addf %451, %452 : vector<8x128xf32>
    %454 = arith.addf %453, %35 : vector<8x128xf32>
    %455 = math.tanh %454 : vector<8x128xf32>
    %c8_i32 = arith.constant 8 : i32
    %456 = vector.broadcast %0 : f32 to vector<8x128xf32>
    %457 = arith.mulf %456, %416 : vector<8x128xf32>
    %458 = vector.broadcast %4 : f32 to vector<8x128xf32>
    %459 = arith.mulf %458, %429 : vector<8x128xf32>
    %460 = vector.broadcast %8 : f32 to vector<8x128xf32>
    %461 = arith.mulf %460, %442 : vector<8x128xf32>
    %462 = vector.broadcast %12 : f32 to vector<8x128xf32>
    %463 = arith.mulf %462, %455 : vector<8x128xf32>
    %464 = arith.addf %457, %459 : vector<8x128xf32>
    %465 = arith.addf %461, %463 : vector<8x128xf32>
    %466 = arith.addf %464, %465 : vector<8x128xf32>
    %467 = arith.addf %466, %20 : vector<8x128xf32>
    %468 = math.tanh %467 : vector<8x128xf32>
    %469 = vector.broadcast %1 : f32 to vector<8x128xf32>
    %470 = arith.mulf %469, %416 : vector<8x128xf32>
    %471 = vector.broadcast %5 : f32 to vector<8x128xf32>
    %472 = arith.mulf %471, %429 : vector<8x128xf32>
    %473 = vector.broadcast %9 : f32 to vector<8x128xf32>
    %474 = arith.mulf %473, %442 : vector<8x128xf32>
    %475 = vector.broadcast %13 : f32 to vector<8x128xf32>
    %476 = arith.mulf %475, %455 : vector<8x128xf32>
    %477 = arith.addf %470, %472 : vector<8x128xf32>
    %478 = arith.addf %474, %476 : vector<8x128xf32>
    %479 = arith.addf %477, %478 : vector<8x128xf32>
    %480 = arith.addf %479, %25 : vector<8x128xf32>
    %481 = math.tanh %480 : vector<8x128xf32>
    %482 = vector.broadcast %2 : f32 to vector<8x128xf32>
    %483 = arith.mulf %482, %416 : vector<8x128xf32>
    %484 = vector.broadcast %6 : f32 to vector<8x128xf32>
    %485 = arith.mulf %484, %429 : vector<8x128xf32>
    %486 = vector.broadcast %10 : f32 to vector<8x128xf32>
    %487 = arith.mulf %486, %442 : vector<8x128xf32>
    %488 = vector.broadcast %14 : f32 to vector<8x128xf32>
    %489 = arith.mulf %488, %455 : vector<8x128xf32>
    %490 = arith.addf %483, %485 : vector<8x128xf32>
    %491 = arith.addf %487, %489 : vector<8x128xf32>
    %492 = arith.addf %490, %491 : vector<8x128xf32>
    %493 = arith.addf %492, %30 : vector<8x128xf32>
    %494 = math.tanh %493 : vector<8x128xf32>
    %495 = vector.broadcast %3 : f32 to vector<8x128xf32>
    %496 = arith.mulf %495, %416 : vector<8x128xf32>
    %497 = vector.broadcast %7 : f32 to vector<8x128xf32>
    %498 = arith.mulf %497, %429 : vector<8x128xf32>
    %499 = vector.broadcast %11 : f32 to vector<8x128xf32>
    %500 = arith.mulf %499, %442 : vector<8x128xf32>
    %501 = vector.broadcast %15 : f32 to vector<8x128xf32>
    %502 = arith.mulf %501, %455 : vector<8x128xf32>
    %503 = arith.addf %496, %498 : vector<8x128xf32>
    %504 = arith.addf %500, %502 : vector<8x128xf32>
    %505 = arith.addf %503, %504 : vector<8x128xf32>
    %506 = arith.addf %505, %35 : vector<8x128xf32>
    %507 = math.tanh %506 : vector<8x128xf32>
    %c9_i32 = arith.constant 9 : i32
    %508 = vector.broadcast %0 : f32 to vector<8x128xf32>
    %509 = arith.mulf %508, %468 : vector<8x128xf32>
    %510 = vector.broadcast %4 : f32 to vector<8x128xf32>
    %511 = arith.mulf %510, %481 : vector<8x128xf32>
    %512 = vector.broadcast %8 : f32 to vector<8x128xf32>
    %513 = arith.mulf %512, %494 : vector<8x128xf32>
    %514 = vector.broadcast %12 : f32 to vector<8x128xf32>
    %515 = arith.mulf %514, %507 : vector<8x128xf32>
    %516 = arith.addf %509, %511 : vector<8x128xf32>
    %517 = arith.addf %513, %515 : vector<8x128xf32>
    %518 = arith.addf %516, %517 : vector<8x128xf32>
    %519 = arith.addf %518, %20 : vector<8x128xf32>
    %520 = math.tanh %519 : vector<8x128xf32>
    %521 = vector.broadcast %1 : f32 to vector<8x128xf32>
    %522 = arith.mulf %521, %468 : vector<8x128xf32>
    %523 = vector.broadcast %5 : f32 to vector<8x128xf32>
    %524 = arith.mulf %523, %481 : vector<8x128xf32>
    %525 = vector.broadcast %9 : f32 to vector<8x128xf32>
    %526 = arith.mulf %525, %494 : vector<8x128xf32>
    %527 = vector.broadcast %13 : f32 to vector<8x128xf32>
    %528 = arith.mulf %527, %507 : vector<8x128xf32>
    %529 = arith.addf %522, %524 : vector<8x128xf32>
    %530 = arith.addf %526, %528 : vector<8x128xf32>
    %531 = arith.addf %529, %530 : vector<8x128xf32>
    %532 = arith.addf %531, %25 : vector<8x128xf32>
    %533 = math.tanh %532 : vector<8x128xf32>
    %534 = vector.broadcast %2 : f32 to vector<8x128xf32>
    %535 = arith.mulf %534, %468 : vector<8x128xf32>
    %536 = vector.broadcast %6 : f32 to vector<8x128xf32>
    %537 = arith.mulf %536, %481 : vector<8x128xf32>
    %538 = vector.broadcast %10 : f32 to vector<8x128xf32>
    %539 = arith.mulf %538, %494 : vector<8x128xf32>
    %540 = vector.broadcast %14 : f32 to vector<8x128xf32>
    %541 = arith.mulf %540, %507 : vector<8x128xf32>
    %542 = arith.addf %535, %537 : vector<8x128xf32>
    %543 = arith.addf %539, %541 : vector<8x128xf32>
    %544 = arith.addf %542, %543 : vector<8x128xf32>
    %545 = arith.addf %544, %30 : vector<8x128xf32>
    %546 = math.tanh %545 : vector<8x128xf32>
    %547 = vector.broadcast %3 : f32 to vector<8x128xf32>
    %548 = arith.mulf %547, %468 : vector<8x128xf32>
    %549 = vector.broadcast %7 : f32 to vector<8x128xf32>
    %550 = arith.mulf %549, %481 : vector<8x128xf32>
    %551 = vector.broadcast %11 : f32 to vector<8x128xf32>
    %552 = arith.mulf %551, %494 : vector<8x128xf32>
    %553 = vector.broadcast %15 : f32 to vector<8x128xf32>
    %554 = arith.mulf %553, %507 : vector<8x128xf32>
    %555 = arith.addf %548, %550 : vector<8x128xf32>
    %556 = arith.addf %552, %554 : vector<8x128xf32>
    %557 = arith.addf %555, %556 : vector<8x128xf32>
    %558 = arith.addf %557, %35 : vector<8x128xf32>
    %559 = math.tanh %558 : vector<8x128xf32>
    %c10_i32 = arith.constant 10 : i32
    %560 = vector.broadcast %0 : f32 to vector<8x128xf32>
    %561 = arith.mulf %560, %520 : vector<8x128xf32>
    %562 = vector.broadcast %4 : f32 to vector<8x128xf32>
    %563 = arith.mulf %562, %533 : vector<8x128xf32>
    %564 = vector.broadcast %8 : f32 to vector<8x128xf32>
    %565 = arith.mulf %564, %546 : vector<8x128xf32>
    %566 = vector.broadcast %12 : f32 to vector<8x128xf32>
    %567 = arith.mulf %566, %559 : vector<8x128xf32>
    %568 = arith.addf %561, %563 : vector<8x128xf32>
    %569 = arith.addf %565, %567 : vector<8x128xf32>
    %570 = arith.addf %568, %569 : vector<8x128xf32>
    %571 = arith.addf %570, %20 : vector<8x128xf32>
    %572 = math.tanh %571 : vector<8x128xf32>
    %573 = vector.broadcast %1 : f32 to vector<8x128xf32>
    %574 = arith.mulf %573, %520 : vector<8x128xf32>
    %575 = vector.broadcast %5 : f32 to vector<8x128xf32>
    %576 = arith.mulf %575, %533 : vector<8x128xf32>
    %577 = vector.broadcast %9 : f32 to vector<8x128xf32>
    %578 = arith.mulf %577, %546 : vector<8x128xf32>
    %579 = vector.broadcast %13 : f32 to vector<8x128xf32>
    %580 = arith.mulf %579, %559 : vector<8x128xf32>
    %581 = arith.addf %574, %576 : vector<8x128xf32>
    %582 = arith.addf %578, %580 : vector<8x128xf32>
    %583 = arith.addf %581, %582 : vector<8x128xf32>
    %584 = arith.addf %583, %25 : vector<8x128xf32>
    %585 = math.tanh %584 : vector<8x128xf32>
    %586 = vector.broadcast %2 : f32 to vector<8x128xf32>
    %587 = arith.mulf %586, %520 : vector<8x128xf32>
    %588 = vector.broadcast %6 : f32 to vector<8x128xf32>
    %589 = arith.mulf %588, %533 : vector<8x128xf32>
    %590 = vector.broadcast %10 : f32 to vector<8x128xf32>
    %591 = arith.mulf %590, %546 : vector<8x128xf32>
    %592 = vector.broadcast %14 : f32 to vector<8x128xf32>
    %593 = arith.mulf %592, %559 : vector<8x128xf32>
    %594 = arith.addf %587, %589 : vector<8x128xf32>
    %595 = arith.addf %591, %593 : vector<8x128xf32>
    %596 = arith.addf %594, %595 : vector<8x128xf32>
    %597 = arith.addf %596, %30 : vector<8x128xf32>
    %598 = math.tanh %597 : vector<8x128xf32>
    %599 = vector.broadcast %3 : f32 to vector<8x128xf32>
    %600 = arith.mulf %599, %520 : vector<8x128xf32>
    %601 = vector.broadcast %7 : f32 to vector<8x128xf32>
    %602 = arith.mulf %601, %533 : vector<8x128xf32>
    %603 = vector.broadcast %11 : f32 to vector<8x128xf32>
    %604 = arith.mulf %603, %546 : vector<8x128xf32>
    %605 = vector.broadcast %15 : f32 to vector<8x128xf32>
    %606 = arith.mulf %605, %559 : vector<8x128xf32>
    %607 = arith.addf %600, %602 : vector<8x128xf32>
    %608 = arith.addf %604, %606 : vector<8x128xf32>
    %609 = arith.addf %607, %608 : vector<8x128xf32>
    %610 = arith.addf %609, %35 : vector<8x128xf32>
    %611 = math.tanh %610 : vector<8x128xf32>
    %c11_i32 = arith.constant 11 : i32
    %612 = vector.broadcast %0 : f32 to vector<8x128xf32>
    %613 = arith.mulf %612, %572 : vector<8x128xf32>
    %614 = vector.broadcast %4 : f32 to vector<8x128xf32>
    %615 = arith.mulf %614, %585 : vector<8x128xf32>
    %616 = vector.broadcast %8 : f32 to vector<8x128xf32>
    %617 = arith.mulf %616, %598 : vector<8x128xf32>
    %618 = vector.broadcast %12 : f32 to vector<8x128xf32>
    %619 = arith.mulf %618, %611 : vector<8x128xf32>
    %620 = arith.addf %613, %615 : vector<8x128xf32>
    %621 = arith.addf %617, %619 : vector<8x128xf32>
    %622 = arith.addf %620, %621 : vector<8x128xf32>
    %623 = arith.addf %622, %20 : vector<8x128xf32>
    %624 = math.tanh %623 : vector<8x128xf32>
    %625 = vector.broadcast %1 : f32 to vector<8x128xf32>
    %626 = arith.mulf %625, %572 : vector<8x128xf32>
    %627 = vector.broadcast %5 : f32 to vector<8x128xf32>
    %628 = arith.mulf %627, %585 : vector<8x128xf32>
    %629 = vector.broadcast %9 : f32 to vector<8x128xf32>
    %630 = arith.mulf %629, %598 : vector<8x128xf32>
    %631 = vector.broadcast %13 : f32 to vector<8x128xf32>
    %632 = arith.mulf %631, %611 : vector<8x128xf32>
    %633 = arith.addf %626, %628 : vector<8x128xf32>
    %634 = arith.addf %630, %632 : vector<8x128xf32>
    %635 = arith.addf %633, %634 : vector<8x128xf32>
    %636 = arith.addf %635, %25 : vector<8x128xf32>
    %637 = math.tanh %636 : vector<8x128xf32>
    %638 = vector.broadcast %2 : f32 to vector<8x128xf32>
    %639 = arith.mulf %638, %572 : vector<8x128xf32>
    %640 = vector.broadcast %6 : f32 to vector<8x128xf32>
    %641 = arith.mulf %640, %585 : vector<8x128xf32>
    %642 = vector.broadcast %10 : f32 to vector<8x128xf32>
    %643 = arith.mulf %642, %598 : vector<8x128xf32>
    %644 = vector.broadcast %14 : f32 to vector<8x128xf32>
    %645 = arith.mulf %644, %611 : vector<8x128xf32>
    %646 = arith.addf %639, %641 : vector<8x128xf32>
    %647 = arith.addf %643, %645 : vector<8x128xf32>
    %648 = arith.addf %646, %647 : vector<8x128xf32>
    %649 = arith.addf %648, %30 : vector<8x128xf32>
    %650 = math.tanh %649 : vector<8x128xf32>
    %651 = vector.broadcast %3 : f32 to vector<8x128xf32>
    %652 = arith.mulf %651, %572 : vector<8x128xf32>
    %653 = vector.broadcast %7 : f32 to vector<8x128xf32>
    %654 = arith.mulf %653, %585 : vector<8x128xf32>
    %655 = vector.broadcast %11 : f32 to vector<8x128xf32>
    %656 = arith.mulf %655, %598 : vector<8x128xf32>
    %657 = vector.broadcast %15 : f32 to vector<8x128xf32>
    %658 = arith.mulf %657, %611 : vector<8x128xf32>
    %659 = arith.addf %652, %654 : vector<8x128xf32>
    %660 = arith.addf %656, %658 : vector<8x128xf32>
    %661 = arith.addf %659, %660 : vector<8x128xf32>
    %662 = arith.addf %661, %35 : vector<8x128xf32>
    %663 = math.tanh %662 : vector<8x128xf32>
    %c12_i32 = arith.constant 12 : i32
    %664 = vector.broadcast %0 : f32 to vector<8x128xf32>
    %665 = arith.mulf %664, %624 : vector<8x128xf32>
    %666 = vector.broadcast %4 : f32 to vector<8x128xf32>
    %667 = arith.mulf %666, %637 : vector<8x128xf32>
    %668 = vector.broadcast %8 : f32 to vector<8x128xf32>
    %669 = arith.mulf %668, %650 : vector<8x128xf32>
    %670 = vector.broadcast %12 : f32 to vector<8x128xf32>
    %671 = arith.mulf %670, %663 : vector<8x128xf32>
    %672 = arith.addf %665, %667 : vector<8x128xf32>
    %673 = arith.addf %669, %671 : vector<8x128xf32>
    %674 = arith.addf %672, %673 : vector<8x128xf32>
    %675 = arith.addf %674, %20 : vector<8x128xf32>
    %676 = math.tanh %675 : vector<8x128xf32>
    %677 = vector.broadcast %1 : f32 to vector<8x128xf32>
    %678 = arith.mulf %677, %624 : vector<8x128xf32>
    %679 = vector.broadcast %5 : f32 to vector<8x128xf32>
    %680 = arith.mulf %679, %637 : vector<8x128xf32>
    %681 = vector.broadcast %9 : f32 to vector<8x128xf32>
    %682 = arith.mulf %681, %650 : vector<8x128xf32>
    %683 = vector.broadcast %13 : f32 to vector<8x128xf32>
    %684 = arith.mulf %683, %663 : vector<8x128xf32>
    %685 = arith.addf %678, %680 : vector<8x128xf32>
    %686 = arith.addf %682, %684 : vector<8x128xf32>
    %687 = arith.addf %685, %686 : vector<8x128xf32>
    %688 = arith.addf %687, %25 : vector<8x128xf32>
    %689 = math.tanh %688 : vector<8x128xf32>
    %690 = vector.broadcast %2 : f32 to vector<8x128xf32>
    %691 = arith.mulf %690, %624 : vector<8x128xf32>
    %692 = vector.broadcast %6 : f32 to vector<8x128xf32>
    %693 = arith.mulf %692, %637 : vector<8x128xf32>
    %694 = vector.broadcast %10 : f32 to vector<8x128xf32>
    %695 = arith.mulf %694, %650 : vector<8x128xf32>
    %696 = vector.broadcast %14 : f32 to vector<8x128xf32>
    %697 = arith.mulf %696, %663 : vector<8x128xf32>
    %698 = arith.addf %691, %693 : vector<8x128xf32>
    %699 = arith.addf %695, %697 : vector<8x128xf32>
    %700 = arith.addf %698, %699 : vector<8x128xf32>
    %701 = arith.addf %700, %30 : vector<8x128xf32>
    %702 = math.tanh %701 : vector<8x128xf32>
    %703 = vector.broadcast %3 : f32 to vector<8x128xf32>
    %704 = arith.mulf %703, %624 : vector<8x128xf32>
    %705 = vector.broadcast %7 : f32 to vector<8x128xf32>
    %706 = arith.mulf %705, %637 : vector<8x128xf32>
    %707 = vector.broadcast %11 : f32 to vector<8x128xf32>
    %708 = arith.mulf %707, %650 : vector<8x128xf32>
    %709 = vector.broadcast %15 : f32 to vector<8x128xf32>
    %710 = arith.mulf %709, %663 : vector<8x128xf32>
    %711 = arith.addf %704, %706 : vector<8x128xf32>
    %712 = arith.addf %708, %710 : vector<8x128xf32>
    %713 = arith.addf %711, %712 : vector<8x128xf32>
    %714 = arith.addf %713, %35 : vector<8x128xf32>
    %715 = math.tanh %714 : vector<8x128xf32>
    %c13_i32 = arith.constant 13 : i32
    %716 = vector.broadcast %0 : f32 to vector<8x128xf32>
    %717 = arith.mulf %716, %676 : vector<8x128xf32>
    %718 = vector.broadcast %4 : f32 to vector<8x128xf32>
    %719 = arith.mulf %718, %689 : vector<8x128xf32>
    %720 = vector.broadcast %8 : f32 to vector<8x128xf32>
    %721 = arith.mulf %720, %702 : vector<8x128xf32>
    %722 = vector.broadcast %12 : f32 to vector<8x128xf32>
    %723 = arith.mulf %722, %715 : vector<8x128xf32>
    %724 = arith.addf %717, %719 : vector<8x128xf32>
    %725 = arith.addf %721, %723 : vector<8x128xf32>
    %726 = arith.addf %724, %725 : vector<8x128xf32>
    %727 = arith.addf %726, %20 : vector<8x128xf32>
    %728 = math.tanh %727 : vector<8x128xf32>
    %729 = vector.broadcast %1 : f32 to vector<8x128xf32>
    %730 = arith.mulf %729, %676 : vector<8x128xf32>
    %731 = vector.broadcast %5 : f32 to vector<8x128xf32>
    %732 = arith.mulf %731, %689 : vector<8x128xf32>
    %733 = vector.broadcast %9 : f32 to vector<8x128xf32>
    %734 = arith.mulf %733, %702 : vector<8x128xf32>
    %735 = vector.broadcast %13 : f32 to vector<8x128xf32>
    %736 = arith.mulf %735, %715 : vector<8x128xf32>
    %737 = arith.addf %730, %732 : vector<8x128xf32>
    %738 = arith.addf %734, %736 : vector<8x128xf32>
    %739 = arith.addf %737, %738 : vector<8x128xf32>
    %740 = arith.addf %739, %25 : vector<8x128xf32>
    %741 = math.tanh %740 : vector<8x128xf32>
    %742 = vector.broadcast %2 : f32 to vector<8x128xf32>
    %743 = arith.mulf %742, %676 : vector<8x128xf32>
    %744 = vector.broadcast %6 : f32 to vector<8x128xf32>
    %745 = arith.mulf %744, %689 : vector<8x128xf32>
    %746 = vector.broadcast %10 : f32 to vector<8x128xf32>
    %747 = arith.mulf %746, %702 : vector<8x128xf32>
    %748 = vector.broadcast %14 : f32 to vector<8x128xf32>
    %749 = arith.mulf %748, %715 : vector<8x128xf32>
    %750 = arith.addf %743, %745 : vector<8x128xf32>
    %751 = arith.addf %747, %749 : vector<8x128xf32>
    %752 = arith.addf %750, %751 : vector<8x128xf32>
    %753 = arith.addf %752, %30 : vector<8x128xf32>
    %754 = math.tanh %753 : vector<8x128xf32>
    %755 = vector.broadcast %3 : f32 to vector<8x128xf32>
    %756 = arith.mulf %755, %676 : vector<8x128xf32>
    %757 = vector.broadcast %7 : f32 to vector<8x128xf32>
    %758 = arith.mulf %757, %689 : vector<8x128xf32>
    %759 = vector.broadcast %11 : f32 to vector<8x128xf32>
    %760 = arith.mulf %759, %702 : vector<8x128xf32>
    %761 = vector.broadcast %15 : f32 to vector<8x128xf32>
    %762 = arith.mulf %761, %715 : vector<8x128xf32>
    %763 = arith.addf %756, %758 : vector<8x128xf32>
    %764 = arith.addf %760, %762 : vector<8x128xf32>
    %765 = arith.addf %763, %764 : vector<8x128xf32>
    %766 = arith.addf %765, %35 : vector<8x128xf32>
    %767 = math.tanh %766 : vector<8x128xf32>
    %c14_i32 = arith.constant 14 : i32
    %768 = vector.broadcast %0 : f32 to vector<8x128xf32>
    %769 = arith.mulf %768, %728 : vector<8x128xf32>
    %770 = vector.broadcast %4 : f32 to vector<8x128xf32>
    %771 = arith.mulf %770, %741 : vector<8x128xf32>
    %772 = vector.broadcast %8 : f32 to vector<8x128xf32>
    %773 = arith.mulf %772, %754 : vector<8x128xf32>
    %774 = vector.broadcast %12 : f32 to vector<8x128xf32>
    %775 = arith.mulf %774, %767 : vector<8x128xf32>
    %776 = arith.addf %769, %771 : vector<8x128xf32>
    %777 = arith.addf %773, %775 : vector<8x128xf32>
    %778 = arith.addf %776, %777 : vector<8x128xf32>
    %779 = arith.addf %778, %20 : vector<8x128xf32>
    %780 = math.tanh %779 : vector<8x128xf32>
    %781 = vector.broadcast %1 : f32 to vector<8x128xf32>
    %782 = arith.mulf %781, %728 : vector<8x128xf32>
    %783 = vector.broadcast %5 : f32 to vector<8x128xf32>
    %784 = arith.mulf %783, %741 : vector<8x128xf32>
    %785 = vector.broadcast %9 : f32 to vector<8x128xf32>
    %786 = arith.mulf %785, %754 : vector<8x128xf32>
    %787 = vector.broadcast %13 : f32 to vector<8x128xf32>
    %788 = arith.mulf %787, %767 : vector<8x128xf32>
    %789 = arith.addf %782, %784 : vector<8x128xf32>
    %790 = arith.addf %786, %788 : vector<8x128xf32>
    %791 = arith.addf %789, %790 : vector<8x128xf32>
    %792 = arith.addf %791, %25 : vector<8x128xf32>
    %793 = math.tanh %792 : vector<8x128xf32>
    %794 = vector.broadcast %2 : f32 to vector<8x128xf32>
    %795 = arith.mulf %794, %728 : vector<8x128xf32>
    %796 = vector.broadcast %6 : f32 to vector<8x128xf32>
    %797 = arith.mulf %796, %741 : vector<8x128xf32>
    %798 = vector.broadcast %10 : f32 to vector<8x128xf32>
    %799 = arith.mulf %798, %754 : vector<8x128xf32>
    %800 = vector.broadcast %14 : f32 to vector<8x128xf32>
    %801 = arith.mulf %800, %767 : vector<8x128xf32>
    %802 = arith.addf %795, %797 : vector<8x128xf32>
    %803 = arith.addf %799, %801 : vector<8x128xf32>
    %804 = arith.addf %802, %803 : vector<8x128xf32>
    %805 = arith.addf %804, %30 : vector<8x128xf32>
    %806 = math.tanh %805 : vector<8x128xf32>
    %807 = vector.broadcast %3 : f32 to vector<8x128xf32>
    %808 = arith.mulf %807, %728 : vector<8x128xf32>
    %809 = vector.broadcast %7 : f32 to vector<8x128xf32>
    %810 = arith.mulf %809, %741 : vector<8x128xf32>
    %811 = vector.broadcast %11 : f32 to vector<8x128xf32>
    %812 = arith.mulf %811, %754 : vector<8x128xf32>
    %813 = vector.broadcast %15 : f32 to vector<8x128xf32>
    %814 = arith.mulf %813, %767 : vector<8x128xf32>
    %815 = arith.addf %808, %810 : vector<8x128xf32>
    %816 = arith.addf %812, %814 : vector<8x128xf32>
    %817 = arith.addf %815, %816 : vector<8x128xf32>
    %818 = arith.addf %817, %35 : vector<8x128xf32>
    %819 = math.tanh %818 : vector<8x128xf32>
    %c15_i32 = arith.constant 15 : i32
    %820 = vector.broadcast %0 : f32 to vector<8x128xf32>
    %821 = arith.mulf %820, %780 : vector<8x128xf32>
    %822 = vector.broadcast %4 : f32 to vector<8x128xf32>
    %823 = arith.mulf %822, %793 : vector<8x128xf32>
    %824 = vector.broadcast %8 : f32 to vector<8x128xf32>
    %825 = arith.mulf %824, %806 : vector<8x128xf32>
    %826 = vector.broadcast %12 : f32 to vector<8x128xf32>
    %827 = arith.mulf %826, %819 : vector<8x128xf32>
    %828 = arith.addf %821, %823 : vector<8x128xf32>
    %829 = arith.addf %825, %827 : vector<8x128xf32>
    %830 = arith.addf %828, %829 : vector<8x128xf32>
    %831 = arith.addf %830, %20 : vector<8x128xf32>
    %832 = math.tanh %831 : vector<8x128xf32>
    %833 = vector.broadcast %1 : f32 to vector<8x128xf32>
    %834 = arith.mulf %833, %780 : vector<8x128xf32>
    %835 = vector.broadcast %5 : f32 to vector<8x128xf32>
    %836 = arith.mulf %835, %793 : vector<8x128xf32>
    %837 = vector.broadcast %9 : f32 to vector<8x128xf32>
    %838 = arith.mulf %837, %806 : vector<8x128xf32>
    %839 = vector.broadcast %13 : f32 to vector<8x128xf32>
    %840 = arith.mulf %839, %819 : vector<8x128xf32>
    %841 = arith.addf %834, %836 : vector<8x128xf32>
    %842 = arith.addf %838, %840 : vector<8x128xf32>
    %843 = arith.addf %841, %842 : vector<8x128xf32>
    %844 = arith.addf %843, %25 : vector<8x128xf32>
    %845 = math.tanh %844 : vector<8x128xf32>
    %846 = vector.broadcast %2 : f32 to vector<8x128xf32>
    %847 = arith.mulf %846, %780 : vector<8x128xf32>
    %848 = vector.broadcast %6 : f32 to vector<8x128xf32>
    %849 = arith.mulf %848, %793 : vector<8x128xf32>
    %850 = vector.broadcast %10 : f32 to vector<8x128xf32>
    %851 = arith.mulf %850, %806 : vector<8x128xf32>
    %852 = vector.broadcast %14 : f32 to vector<8x128xf32>
    %853 = arith.mulf %852, %819 : vector<8x128xf32>
    %854 = arith.addf %847, %849 : vector<8x128xf32>
    %855 = arith.addf %851, %853 : vector<8x128xf32>
    %856 = arith.addf %854, %855 : vector<8x128xf32>
    %857 = arith.addf %856, %30 : vector<8x128xf32>
    %858 = math.tanh %857 : vector<8x128xf32>
    %859 = vector.broadcast %3 : f32 to vector<8x128xf32>
    %860 = arith.mulf %859, %780 : vector<8x128xf32>
    %861 = vector.broadcast %7 : f32 to vector<8x128xf32>
    %862 = arith.mulf %861, %793 : vector<8x128xf32>
    %863 = vector.broadcast %11 : f32 to vector<8x128xf32>
    %864 = arith.mulf %863, %806 : vector<8x128xf32>
    %865 = vector.broadcast %15 : f32 to vector<8x128xf32>
    %866 = arith.mulf %865, %819 : vector<8x128xf32>
    %867 = arith.addf %860, %862 : vector<8x128xf32>
    %868 = arith.addf %864, %866 : vector<8x128xf32>
    %869 = arith.addf %867, %868 : vector<8x128xf32>
    %870 = arith.addf %869, %35 : vector<8x128xf32>
    %871 = math.tanh %870 : vector<8x128xf32>
    %c16_i32 = arith.constant 16 : i32
    %872 = vector.broadcast %0 : f32 to vector<8x128xf32>
    %873 = arith.mulf %872, %832 : vector<8x128xf32>
    %874 = vector.broadcast %4 : f32 to vector<8x128xf32>
    %875 = arith.mulf %874, %845 : vector<8x128xf32>
    %876 = vector.broadcast %8 : f32 to vector<8x128xf32>
    %877 = arith.mulf %876, %858 : vector<8x128xf32>
    %878 = vector.broadcast %12 : f32 to vector<8x128xf32>
    %879 = arith.mulf %878, %871 : vector<8x128xf32>
    %880 = arith.addf %873, %875 : vector<8x128xf32>
    %881 = arith.addf %877, %879 : vector<8x128xf32>
    %882 = arith.addf %880, %881 : vector<8x128xf32>
    %883 = arith.addf %882, %20 : vector<8x128xf32>
    %884 = math.tanh %883 : vector<8x128xf32>
    %885 = vector.broadcast %1 : f32 to vector<8x128xf32>
    %886 = arith.mulf %885, %832 : vector<8x128xf32>
    %887 = vector.broadcast %5 : f32 to vector<8x128xf32>
    %888 = arith.mulf %887, %845 : vector<8x128xf32>
    %889 = vector.broadcast %9 : f32 to vector<8x128xf32>
    %890 = arith.mulf %889, %858 : vector<8x128xf32>
    %891 = vector.broadcast %13 : f32 to vector<8x128xf32>
    %892 = arith.mulf %891, %871 : vector<8x128xf32>
    %893 = arith.addf %886, %888 : vector<8x128xf32>
    %894 = arith.addf %890, %892 : vector<8x128xf32>
    %895 = arith.addf %893, %894 : vector<8x128xf32>
    %896 = arith.addf %895, %25 : vector<8x128xf32>
    %897 = math.tanh %896 : vector<8x128xf32>
    %898 = vector.broadcast %2 : f32 to vector<8x128xf32>
    %899 = arith.mulf %898, %832 : vector<8x128xf32>
    %900 = vector.broadcast %6 : f32 to vector<8x128xf32>
    %901 = arith.mulf %900, %845 : vector<8x128xf32>
    %902 = vector.broadcast %10 : f32 to vector<8x128xf32>
    %903 = arith.mulf %902, %858 : vector<8x128xf32>
    %904 = vector.broadcast %14 : f32 to vector<8x128xf32>
    %905 = arith.mulf %904, %871 : vector<8x128xf32>
    %906 = arith.addf %899, %901 : vector<8x128xf32>
    %907 = arith.addf %903, %905 : vector<8x128xf32>
    %908 = arith.addf %906, %907 : vector<8x128xf32>
    %909 = arith.addf %908, %30 : vector<8x128xf32>
    %910 = math.tanh %909 : vector<8x128xf32>
    %911 = vector.broadcast %3 : f32 to vector<8x128xf32>
    %912 = arith.mulf %911, %832 : vector<8x128xf32>
    %913 = vector.broadcast %7 : f32 to vector<8x128xf32>
    %914 = arith.mulf %913, %845 : vector<8x128xf32>
    %915 = vector.broadcast %11 : f32 to vector<8x128xf32>
    %916 = arith.mulf %915, %858 : vector<8x128xf32>
    %917 = vector.broadcast %15 : f32 to vector<8x128xf32>
    %918 = arith.mulf %917, %871 : vector<8x128xf32>
    %919 = arith.addf %912, %914 : vector<8x128xf32>
    %920 = arith.addf %916, %918 : vector<8x128xf32>
    %921 = arith.addf %919, %920 : vector<8x128xf32>
    %922 = arith.addf %921, %35 : vector<8x128xf32>
    %923 = math.tanh %922 : vector<8x128xf32>
    %c17_i32 = arith.constant 17 : i32
    %924 = vector.broadcast %0 : f32 to vector<8x128xf32>
    %925 = arith.mulf %924, %884 : vector<8x128xf32>
    %926 = vector.broadcast %4 : f32 to vector<8x128xf32>
    %927 = arith.mulf %926, %897 : vector<8x128xf32>
    %928 = vector.broadcast %8 : f32 to vector<8x128xf32>
    %929 = arith.mulf %928, %910 : vector<8x128xf32>
    %930 = vector.broadcast %12 : f32 to vector<8x128xf32>
    %931 = arith.mulf %930, %923 : vector<8x128xf32>
    %932 = arith.addf %925, %927 : vector<8x128xf32>
    %933 = arith.addf %929, %931 : vector<8x128xf32>
    %934 = arith.addf %932, %933 : vector<8x128xf32>
    %935 = arith.addf %934, %20 : vector<8x128xf32>
    %936 = math.tanh %935 : vector<8x128xf32>
    %937 = vector.broadcast %1 : f32 to vector<8x128xf32>
    %938 = arith.mulf %937, %884 : vector<8x128xf32>
    %939 = vector.broadcast %5 : f32 to vector<8x128xf32>
    %940 = arith.mulf %939, %897 : vector<8x128xf32>
    %941 = vector.broadcast %9 : f32 to vector<8x128xf32>
    %942 = arith.mulf %941, %910 : vector<8x128xf32>
    %943 = vector.broadcast %13 : f32 to vector<8x128xf32>
    %944 = arith.mulf %943, %923 : vector<8x128xf32>
    %945 = arith.addf %938, %940 : vector<8x128xf32>
    %946 = arith.addf %942, %944 : vector<8x128xf32>
    %947 = arith.addf %945, %946 : vector<8x128xf32>
    %948 = arith.addf %947, %25 : vector<8x128xf32>
    %949 = math.tanh %948 : vector<8x128xf32>
    %950 = vector.broadcast %2 : f32 to vector<8x128xf32>
    %951 = arith.mulf %950, %884 : vector<8x128xf32>
    %952 = vector.broadcast %6 : f32 to vector<8x128xf32>
    %953 = arith.mulf %952, %897 : vector<8x128xf32>
    %954 = vector.broadcast %10 : f32 to vector<8x128xf32>
    %955 = arith.mulf %954, %910 : vector<8x128xf32>
    %956 = vector.broadcast %14 : f32 to vector<8x128xf32>
    %957 = arith.mulf %956, %923 : vector<8x128xf32>
    %958 = arith.addf %951, %953 : vector<8x128xf32>
    %959 = arith.addf %955, %957 : vector<8x128xf32>
    %960 = arith.addf %958, %959 : vector<8x128xf32>
    %961 = arith.addf %960, %30 : vector<8x128xf32>
    %962 = math.tanh %961 : vector<8x128xf32>
    %963 = vector.broadcast %3 : f32 to vector<8x128xf32>
    %964 = arith.mulf %963, %884 : vector<8x128xf32>
    %965 = vector.broadcast %7 : f32 to vector<8x128xf32>
    %966 = arith.mulf %965, %897 : vector<8x128xf32>
    %967 = vector.broadcast %11 : f32 to vector<8x128xf32>
    %968 = arith.mulf %967, %910 : vector<8x128xf32>
    %969 = vector.broadcast %15 : f32 to vector<8x128xf32>
    %970 = arith.mulf %969, %923 : vector<8x128xf32>
    %971 = arith.addf %964, %966 : vector<8x128xf32>
    %972 = arith.addf %968, %970 : vector<8x128xf32>
    %973 = arith.addf %971, %972 : vector<8x128xf32>
    %974 = arith.addf %973, %35 : vector<8x128xf32>
    %975 = math.tanh %974 : vector<8x128xf32>
    %c18_i32 = arith.constant 18 : i32
    %976 = vector.broadcast %0 : f32 to vector<8x128xf32>
    %977 = arith.mulf %976, %936 : vector<8x128xf32>
    %978 = vector.broadcast %4 : f32 to vector<8x128xf32>
    %979 = arith.mulf %978, %949 : vector<8x128xf32>
    %980 = vector.broadcast %8 : f32 to vector<8x128xf32>
    %981 = arith.mulf %980, %962 : vector<8x128xf32>
    %982 = vector.broadcast %12 : f32 to vector<8x128xf32>
    %983 = arith.mulf %982, %975 : vector<8x128xf32>
    %984 = arith.addf %977, %979 : vector<8x128xf32>
    %985 = arith.addf %981, %983 : vector<8x128xf32>
    %986 = arith.addf %984, %985 : vector<8x128xf32>
    %987 = arith.addf %986, %20 : vector<8x128xf32>
    %988 = math.tanh %987 : vector<8x128xf32>
    %989 = vector.broadcast %1 : f32 to vector<8x128xf32>
    %990 = arith.mulf %989, %936 : vector<8x128xf32>
    %991 = vector.broadcast %5 : f32 to vector<8x128xf32>
    %992 = arith.mulf %991, %949 : vector<8x128xf32>
    %993 = vector.broadcast %9 : f32 to vector<8x128xf32>
    %994 = arith.mulf %993, %962 : vector<8x128xf32>
    %995 = vector.broadcast %13 : f32 to vector<8x128xf32>
    %996 = arith.mulf %995, %975 : vector<8x128xf32>
    %997 = arith.addf %990, %992 : vector<8x128xf32>
    %998 = arith.addf %994, %996 : vector<8x128xf32>
    %999 = arith.addf %997, %998 : vector<8x128xf32>
    %1000 = arith.addf %999, %25 : vector<8x128xf32>
    %1001 = math.tanh %1000 : vector<8x128xf32>
    %1002 = vector.broadcast %2 : f32 to vector<8x128xf32>
    %1003 = arith.mulf %1002, %936 : vector<8x128xf32>
    %1004 = vector.broadcast %6 : f32 to vector<8x128xf32>
    %1005 = arith.mulf %1004, %949 : vector<8x128xf32>
    %1006 = vector.broadcast %10 : f32 to vector<8x128xf32>
    %1007 = arith.mulf %1006, %962 : vector<8x128xf32>
    %1008 = vector.broadcast %14 : f32 to vector<8x128xf32>
    %1009 = arith.mulf %1008, %975 : vector<8x128xf32>
    %1010 = arith.addf %1003, %1005 : vector<8x128xf32>
    %1011 = arith.addf %1007, %1009 : vector<8x128xf32>
    %1012 = arith.addf %1010, %1011 : vector<8x128xf32>
    %1013 = arith.addf %1012, %30 : vector<8x128xf32>
    %1014 = math.tanh %1013 : vector<8x128xf32>
    %1015 = vector.broadcast %3 : f32 to vector<8x128xf32>
    %1016 = arith.mulf %1015, %936 : vector<8x128xf32>
    %1017 = vector.broadcast %7 : f32 to vector<8x128xf32>
    %1018 = arith.mulf %1017, %949 : vector<8x128xf32>
    %1019 = vector.broadcast %11 : f32 to vector<8x128xf32>
    %1020 = arith.mulf %1019, %962 : vector<8x128xf32>
    %1021 = vector.broadcast %15 : f32 to vector<8x128xf32>
    %1022 = arith.mulf %1021, %975 : vector<8x128xf32>
    %1023 = arith.addf %1016, %1018 : vector<8x128xf32>
    %1024 = arith.addf %1020, %1022 : vector<8x128xf32>
    %1025 = arith.addf %1023, %1024 : vector<8x128xf32>
    %1026 = arith.addf %1025, %35 : vector<8x128xf32>
    %1027 = math.tanh %1026 : vector<8x128xf32>
    %c19_i32 = arith.constant 19 : i32
    %1028 = vector.broadcast %0 : f32 to vector<8x128xf32>
    %1029 = arith.mulf %1028, %988 : vector<8x128xf32>
    %1030 = vector.broadcast %4 : f32 to vector<8x128xf32>
    %1031 = arith.mulf %1030, %1001 : vector<8x128xf32>
    %1032 = vector.broadcast %8 : f32 to vector<8x128xf32>
    %1033 = arith.mulf %1032, %1014 : vector<8x128xf32>
    %1034 = vector.broadcast %12 : f32 to vector<8x128xf32>
    %1035 = arith.mulf %1034, %1027 : vector<8x128xf32>
    %1036 = arith.addf %1029, %1031 : vector<8x128xf32>
    %1037 = arith.addf %1033, %1035 : vector<8x128xf32>
    %1038 = arith.addf %1036, %1037 : vector<8x128xf32>
    %1039 = arith.addf %1038, %20 : vector<8x128xf32>
    %1040 = math.tanh %1039 : vector<8x128xf32>
    %1041 = vector.broadcast %1 : f32 to vector<8x128xf32>
    %1042 = arith.mulf %1041, %988 : vector<8x128xf32>
    %1043 = vector.broadcast %5 : f32 to vector<8x128xf32>
    %1044 = arith.mulf %1043, %1001 : vector<8x128xf32>
    %1045 = vector.broadcast %9 : f32 to vector<8x128xf32>
    %1046 = arith.mulf %1045, %1014 : vector<8x128xf32>
    %1047 = vector.broadcast %13 : f32 to vector<8x128xf32>
    %1048 = arith.mulf %1047, %1027 : vector<8x128xf32>
    %1049 = arith.addf %1042, %1044 : vector<8x128xf32>
    %1050 = arith.addf %1046, %1048 : vector<8x128xf32>
    %1051 = arith.addf %1049, %1050 : vector<8x128xf32>
    %1052 = arith.addf %1051, %25 : vector<8x128xf32>
    %1053 = math.tanh %1052 : vector<8x128xf32>
    %1054 = vector.broadcast %2 : f32 to vector<8x128xf32>
    %1055 = arith.mulf %1054, %988 : vector<8x128xf32>
    %1056 = vector.broadcast %6 : f32 to vector<8x128xf32>
    %1057 = arith.mulf %1056, %1001 : vector<8x128xf32>
    %1058 = vector.broadcast %10 : f32 to vector<8x128xf32>
    %1059 = arith.mulf %1058, %1014 : vector<8x128xf32>
    %1060 = vector.broadcast %14 : f32 to vector<8x128xf32>
    %1061 = arith.mulf %1060, %1027 : vector<8x128xf32>
    %1062 = arith.addf %1055, %1057 : vector<8x128xf32>
    %1063 = arith.addf %1059, %1061 : vector<8x128xf32>
    %1064 = arith.addf %1062, %1063 : vector<8x128xf32>
    %1065 = arith.addf %1064, %30 : vector<8x128xf32>
    %1066 = math.tanh %1065 : vector<8x128xf32>
    %1067 = vector.broadcast %3 : f32 to vector<8x128xf32>
    %1068 = arith.mulf %1067, %988 : vector<8x128xf32>
    %1069 = vector.broadcast %7 : f32 to vector<8x128xf32>
    %1070 = arith.mulf %1069, %1001 : vector<8x128xf32>
    %1071 = vector.broadcast %11 : f32 to vector<8x128xf32>
    %1072 = arith.mulf %1071, %1014 : vector<8x128xf32>
    %1073 = vector.broadcast %15 : f32 to vector<8x128xf32>
    %1074 = arith.mulf %1073, %1027 : vector<8x128xf32>
    %1075 = arith.addf %1068, %1070 : vector<8x128xf32>
    %1076 = arith.addf %1072, %1074 : vector<8x128xf32>
    %1077 = arith.addf %1075, %1076 : vector<8x128xf32>
    %1078 = arith.addf %1077, %35 : vector<8x128xf32>
    %1079 = math.tanh %1078 : vector<8x128xf32>
    %c20_i32 = arith.constant 20 : i32
    %1080 = vector.broadcast %0 : f32 to vector<8x128xf32>
    %1081 = arith.mulf %1080, %1040 : vector<8x128xf32>
    %1082 = vector.broadcast %4 : f32 to vector<8x128xf32>
    %1083 = arith.mulf %1082, %1053 : vector<8x128xf32>
    %1084 = vector.broadcast %8 : f32 to vector<8x128xf32>
    %1085 = arith.mulf %1084, %1066 : vector<8x128xf32>
    %1086 = vector.broadcast %12 : f32 to vector<8x128xf32>
    %1087 = arith.mulf %1086, %1079 : vector<8x128xf32>
    %1088 = arith.addf %1081, %1083 : vector<8x128xf32>
    %1089 = arith.addf %1085, %1087 : vector<8x128xf32>
    %1090 = arith.addf %1088, %1089 : vector<8x128xf32>
    %1091 = arith.addf %1090, %20 : vector<8x128xf32>
    %1092 = math.tanh %1091 : vector<8x128xf32>
    %1093 = vector.broadcast %1 : f32 to vector<8x128xf32>
    %1094 = arith.mulf %1093, %1040 : vector<8x128xf32>
    %1095 = vector.broadcast %5 : f32 to vector<8x128xf32>
    %1096 = arith.mulf %1095, %1053 : vector<8x128xf32>
    %1097 = vector.broadcast %9 : f32 to vector<8x128xf32>
    %1098 = arith.mulf %1097, %1066 : vector<8x128xf32>
    %1099 = vector.broadcast %13 : f32 to vector<8x128xf32>
    %1100 = arith.mulf %1099, %1079 : vector<8x128xf32>
    %1101 = arith.addf %1094, %1096 : vector<8x128xf32>
    %1102 = arith.addf %1098, %1100 : vector<8x128xf32>
    %1103 = arith.addf %1101, %1102 : vector<8x128xf32>
    %1104 = arith.addf %1103, %25 : vector<8x128xf32>
    %1105 = math.tanh %1104 : vector<8x128xf32>
    %1106 = vector.broadcast %2 : f32 to vector<8x128xf32>
    %1107 = arith.mulf %1106, %1040 : vector<8x128xf32>
    %1108 = vector.broadcast %6 : f32 to vector<8x128xf32>
    %1109 = arith.mulf %1108, %1053 : vector<8x128xf32>
    %1110 = vector.broadcast %10 : f32 to vector<8x128xf32>
    %1111 = arith.mulf %1110, %1066 : vector<8x128xf32>
    %1112 = vector.broadcast %14 : f32 to vector<8x128xf32>
    %1113 = arith.mulf %1112, %1079 : vector<8x128xf32>
    %1114 = arith.addf %1107, %1109 : vector<8x128xf32>
    %1115 = arith.addf %1111, %1113 : vector<8x128xf32>
    %1116 = arith.addf %1114, %1115 : vector<8x128xf32>
    %1117 = arith.addf %1116, %30 : vector<8x128xf32>
    %1118 = math.tanh %1117 : vector<8x128xf32>
    %1119 = vector.broadcast %3 : f32 to vector<8x128xf32>
    %1120 = arith.mulf %1119, %1040 : vector<8x128xf32>
    %1121 = vector.broadcast %7 : f32 to vector<8x128xf32>
    %1122 = arith.mulf %1121, %1053 : vector<8x128xf32>
    %1123 = vector.broadcast %11 : f32 to vector<8x128xf32>
    %1124 = arith.mulf %1123, %1066 : vector<8x128xf32>
    %1125 = vector.broadcast %15 : f32 to vector<8x128xf32>
    %1126 = arith.mulf %1125, %1079 : vector<8x128xf32>
    %1127 = arith.addf %1120, %1122 : vector<8x128xf32>
    %1128 = arith.addf %1124, %1126 : vector<8x128xf32>
    %1129 = arith.addf %1127, %1128 : vector<8x128xf32>
    %1130 = arith.addf %1129, %35 : vector<8x128xf32>
    %1131 = math.tanh %1130 : vector<8x128xf32>
    %c21_i32 = arith.constant 21 : i32
    %1132 = vector.broadcast %0 : f32 to vector<8x128xf32>
    %1133 = arith.mulf %1132, %1092 : vector<8x128xf32>
    %1134 = vector.broadcast %4 : f32 to vector<8x128xf32>
    %1135 = arith.mulf %1134, %1105 : vector<8x128xf32>
    %1136 = vector.broadcast %8 : f32 to vector<8x128xf32>
    %1137 = arith.mulf %1136, %1118 : vector<8x128xf32>
    %1138 = vector.broadcast %12 : f32 to vector<8x128xf32>
    %1139 = arith.mulf %1138, %1131 : vector<8x128xf32>
    %1140 = arith.addf %1133, %1135 : vector<8x128xf32>
    %1141 = arith.addf %1137, %1139 : vector<8x128xf32>
    %1142 = arith.addf %1140, %1141 : vector<8x128xf32>
    %1143 = arith.addf %1142, %20 : vector<8x128xf32>
    %1144 = math.tanh %1143 : vector<8x128xf32>
    %1145 = vector.broadcast %1 : f32 to vector<8x128xf32>
    %1146 = arith.mulf %1145, %1092 : vector<8x128xf32>
    %1147 = vector.broadcast %5 : f32 to vector<8x128xf32>
    %1148 = arith.mulf %1147, %1105 : vector<8x128xf32>
    %1149 = vector.broadcast %9 : f32 to vector<8x128xf32>
    %1150 = arith.mulf %1149, %1118 : vector<8x128xf32>
    %1151 = vector.broadcast %13 : f32 to vector<8x128xf32>
    %1152 = arith.mulf %1151, %1131 : vector<8x128xf32>
    %1153 = arith.addf %1146, %1148 : vector<8x128xf32>
    %1154 = arith.addf %1150, %1152 : vector<8x128xf32>
    %1155 = arith.addf %1153, %1154 : vector<8x128xf32>
    %1156 = arith.addf %1155, %25 : vector<8x128xf32>
    %1157 = math.tanh %1156 : vector<8x128xf32>
    %1158 = vector.broadcast %2 : f32 to vector<8x128xf32>
    %1159 = arith.mulf %1158, %1092 : vector<8x128xf32>
    %1160 = vector.broadcast %6 : f32 to vector<8x128xf32>
    %1161 = arith.mulf %1160, %1105 : vector<8x128xf32>
    %1162 = vector.broadcast %10 : f32 to vector<8x128xf32>
    %1163 = arith.mulf %1162, %1118 : vector<8x128xf32>
    %1164 = vector.broadcast %14 : f32 to vector<8x128xf32>
    %1165 = arith.mulf %1164, %1131 : vector<8x128xf32>
    %1166 = arith.addf %1159, %1161 : vector<8x128xf32>
    %1167 = arith.addf %1163, %1165 : vector<8x128xf32>
    %1168 = arith.addf %1166, %1167 : vector<8x128xf32>
    %1169 = arith.addf %1168, %30 : vector<8x128xf32>
    %1170 = math.tanh %1169 : vector<8x128xf32>
    %1171 = vector.broadcast %3 : f32 to vector<8x128xf32>
    %1172 = arith.mulf %1171, %1092 : vector<8x128xf32>
    %1173 = vector.broadcast %7 : f32 to vector<8x128xf32>
    %1174 = arith.mulf %1173, %1105 : vector<8x128xf32>
    %1175 = vector.broadcast %11 : f32 to vector<8x128xf32>
    %1176 = arith.mulf %1175, %1118 : vector<8x128xf32>
    %1177 = vector.broadcast %15 : f32 to vector<8x128xf32>
    %1178 = arith.mulf %1177, %1131 : vector<8x128xf32>
    %1179 = arith.addf %1172, %1174 : vector<8x128xf32>
    %1180 = arith.addf %1176, %1178 : vector<8x128xf32>
    %1181 = arith.addf %1179, %1180 : vector<8x128xf32>
    %1182 = arith.addf %1181, %35 : vector<8x128xf32>
    %1183 = math.tanh %1182 : vector<8x128xf32>
    %c22_i32 = arith.constant 22 : i32
    %1184 = vector.broadcast %0 : f32 to vector<8x128xf32>
    %1185 = arith.mulf %1184, %1144 : vector<8x128xf32>
    %1186 = vector.broadcast %4 : f32 to vector<8x128xf32>
    %1187 = arith.mulf %1186, %1157 : vector<8x128xf32>
    %1188 = vector.broadcast %8 : f32 to vector<8x128xf32>
    %1189 = arith.mulf %1188, %1170 : vector<8x128xf32>
    %1190 = vector.broadcast %12 : f32 to vector<8x128xf32>
    %1191 = arith.mulf %1190, %1183 : vector<8x128xf32>
    %1192 = arith.addf %1185, %1187 : vector<8x128xf32>
    %1193 = arith.addf %1189, %1191 : vector<8x128xf32>
    %1194 = arith.addf %1192, %1193 : vector<8x128xf32>
    %1195 = arith.addf %1194, %20 : vector<8x128xf32>
    %1196 = math.tanh %1195 : vector<8x128xf32>
    %1197 = vector.broadcast %1 : f32 to vector<8x128xf32>
    %1198 = arith.mulf %1197, %1144 : vector<8x128xf32>
    %1199 = vector.broadcast %5 : f32 to vector<8x128xf32>
    %1200 = arith.mulf %1199, %1157 : vector<8x128xf32>
    %1201 = vector.broadcast %9 : f32 to vector<8x128xf32>
    %1202 = arith.mulf %1201, %1170 : vector<8x128xf32>
    %1203 = vector.broadcast %13 : f32 to vector<8x128xf32>
    %1204 = arith.mulf %1203, %1183 : vector<8x128xf32>
    %1205 = arith.addf %1198, %1200 : vector<8x128xf32>
    %1206 = arith.addf %1202, %1204 : vector<8x128xf32>
    %1207 = arith.addf %1205, %1206 : vector<8x128xf32>
    %1208 = arith.addf %1207, %25 : vector<8x128xf32>
    %1209 = math.tanh %1208 : vector<8x128xf32>
    %1210 = vector.broadcast %2 : f32 to vector<8x128xf32>
    %1211 = arith.mulf %1210, %1144 : vector<8x128xf32>
    %1212 = vector.broadcast %6 : f32 to vector<8x128xf32>
    %1213 = arith.mulf %1212, %1157 : vector<8x128xf32>
    %1214 = vector.broadcast %10 : f32 to vector<8x128xf32>
    %1215 = arith.mulf %1214, %1170 : vector<8x128xf32>
    %1216 = vector.broadcast %14 : f32 to vector<8x128xf32>
    %1217 = arith.mulf %1216, %1183 : vector<8x128xf32>
    %1218 = arith.addf %1211, %1213 : vector<8x128xf32>
    %1219 = arith.addf %1215, %1217 : vector<8x128xf32>
    %1220 = arith.addf %1218, %1219 : vector<8x128xf32>
    %1221 = arith.addf %1220, %30 : vector<8x128xf32>
    %1222 = math.tanh %1221 : vector<8x128xf32>
    %1223 = vector.broadcast %3 : f32 to vector<8x128xf32>
    %1224 = arith.mulf %1223, %1144 : vector<8x128xf32>
    %1225 = vector.broadcast %7 : f32 to vector<8x128xf32>
    %1226 = arith.mulf %1225, %1157 : vector<8x128xf32>
    %1227 = vector.broadcast %11 : f32 to vector<8x128xf32>
    %1228 = arith.mulf %1227, %1170 : vector<8x128xf32>
    %1229 = vector.broadcast %15 : f32 to vector<8x128xf32>
    %1230 = arith.mulf %1229, %1183 : vector<8x128xf32>
    %1231 = arith.addf %1224, %1226 : vector<8x128xf32>
    %1232 = arith.addf %1228, %1230 : vector<8x128xf32>
    %1233 = arith.addf %1231, %1232 : vector<8x128xf32>
    %1234 = arith.addf %1233, %35 : vector<8x128xf32>
    %1235 = math.tanh %1234 : vector<8x128xf32>
    %c23_i32 = arith.constant 23 : i32
    %1236 = vector.broadcast %0 : f32 to vector<8x128xf32>
    %1237 = arith.mulf %1236, %1196 : vector<8x128xf32>
    %1238 = vector.broadcast %4 : f32 to vector<8x128xf32>
    %1239 = arith.mulf %1238, %1209 : vector<8x128xf32>
    %1240 = vector.broadcast %8 : f32 to vector<8x128xf32>
    %1241 = arith.mulf %1240, %1222 : vector<8x128xf32>
    %1242 = vector.broadcast %12 : f32 to vector<8x128xf32>
    %1243 = arith.mulf %1242, %1235 : vector<8x128xf32>
    %1244 = arith.addf %1237, %1239 : vector<8x128xf32>
    %1245 = arith.addf %1241, %1243 : vector<8x128xf32>
    %1246 = arith.addf %1244, %1245 : vector<8x128xf32>
    %1247 = arith.addf %1246, %20 : vector<8x128xf32>
    %1248 = math.tanh %1247 : vector<8x128xf32>
    %1249 = vector.broadcast %1 : f32 to vector<8x128xf32>
    %1250 = arith.mulf %1249, %1196 : vector<8x128xf32>
    %1251 = vector.broadcast %5 : f32 to vector<8x128xf32>
    %1252 = arith.mulf %1251, %1209 : vector<8x128xf32>
    %1253 = vector.broadcast %9 : f32 to vector<8x128xf32>
    %1254 = arith.mulf %1253, %1222 : vector<8x128xf32>
    %1255 = vector.broadcast %13 : f32 to vector<8x128xf32>
    %1256 = arith.mulf %1255, %1235 : vector<8x128xf32>
    %1257 = arith.addf %1250, %1252 : vector<8x128xf32>
    %1258 = arith.addf %1254, %1256 : vector<8x128xf32>
    %1259 = arith.addf %1257, %1258 : vector<8x128xf32>
    %1260 = arith.addf %1259, %25 : vector<8x128xf32>
    %1261 = math.tanh %1260 : vector<8x128xf32>
    %1262 = vector.broadcast %2 : f32 to vector<8x128xf32>
    %1263 = arith.mulf %1262, %1196 : vector<8x128xf32>
    %1264 = vector.broadcast %6 : f32 to vector<8x128xf32>
    %1265 = arith.mulf %1264, %1209 : vector<8x128xf32>
    %1266 = vector.broadcast %10 : f32 to vector<8x128xf32>
    %1267 = arith.mulf %1266, %1222 : vector<8x128xf32>
    %1268 = vector.broadcast %14 : f32 to vector<8x128xf32>
    %1269 = arith.mulf %1268, %1235 : vector<8x128xf32>
    %1270 = arith.addf %1263, %1265 : vector<8x128xf32>
    %1271 = arith.addf %1267, %1269 : vector<8x128xf32>
    %1272 = arith.addf %1270, %1271 : vector<8x128xf32>
    %1273 = arith.addf %1272, %30 : vector<8x128xf32>
    %1274 = math.tanh %1273 : vector<8x128xf32>
    %1275 = vector.broadcast %3 : f32 to vector<8x128xf32>
    %1276 = arith.mulf %1275, %1196 : vector<8x128xf32>
    %1277 = vector.broadcast %7 : f32 to vector<8x128xf32>
    %1278 = arith.mulf %1277, %1209 : vector<8x128xf32>
    %1279 = vector.broadcast %11 : f32 to vector<8x128xf32>
    %1280 = arith.mulf %1279, %1222 : vector<8x128xf32>
    %1281 = vector.broadcast %15 : f32 to vector<8x128xf32>
    %1282 = arith.mulf %1281, %1235 : vector<8x128xf32>
    %1283 = arith.addf %1276, %1278 : vector<8x128xf32>
    %1284 = arith.addf %1280, %1282 : vector<8x128xf32>
    %1285 = arith.addf %1283, %1284 : vector<8x128xf32>
    %1286 = arith.addf %1285, %35 : vector<8x128xf32>
    %1287 = math.tanh %1286 : vector<8x128xf32>
    %c24_i32 = arith.constant 24 : i32
    %1288 = vector.broadcast %0 : f32 to vector<8x128xf32>
    %1289 = arith.mulf %1288, %1248 : vector<8x128xf32>
    %1290 = vector.broadcast %4 : f32 to vector<8x128xf32>
    %1291 = arith.mulf %1290, %1261 : vector<8x128xf32>
    %1292 = vector.broadcast %8 : f32 to vector<8x128xf32>
    %1293 = arith.mulf %1292, %1274 : vector<8x128xf32>
    %1294 = vector.broadcast %12 : f32 to vector<8x128xf32>
    %1295 = arith.mulf %1294, %1287 : vector<8x128xf32>
    %1296 = arith.addf %1289, %1291 : vector<8x128xf32>
    %1297 = arith.addf %1293, %1295 : vector<8x128xf32>
    %1298 = arith.addf %1296, %1297 : vector<8x128xf32>
    %1299 = arith.addf %1298, %20 : vector<8x128xf32>
    %1300 = math.tanh %1299 : vector<8x128xf32>
    %1301 = vector.broadcast %1 : f32 to vector<8x128xf32>
    %1302 = arith.mulf %1301, %1248 : vector<8x128xf32>
    %1303 = vector.broadcast %5 : f32 to vector<8x128xf32>
    %1304 = arith.mulf %1303, %1261 : vector<8x128xf32>
    %1305 = vector.broadcast %9 : f32 to vector<8x128xf32>
    %1306 = arith.mulf %1305, %1274 : vector<8x128xf32>
    %1307 = vector.broadcast %13 : f32 to vector<8x128xf32>
    %1308 = arith.mulf %1307, %1287 : vector<8x128xf32>
    %1309 = arith.addf %1302, %1304 : vector<8x128xf32>
    %1310 = arith.addf %1306, %1308 : vector<8x128xf32>
    %1311 = arith.addf %1309, %1310 : vector<8x128xf32>
    %1312 = arith.addf %1311, %25 : vector<8x128xf32>
    %1313 = math.tanh %1312 : vector<8x128xf32>
    %1314 = vector.broadcast %2 : f32 to vector<8x128xf32>
    %1315 = arith.mulf %1314, %1248 : vector<8x128xf32>
    %1316 = vector.broadcast %6 : f32 to vector<8x128xf32>
    %1317 = arith.mulf %1316, %1261 : vector<8x128xf32>
    %1318 = vector.broadcast %10 : f32 to vector<8x128xf32>
    %1319 = arith.mulf %1318, %1274 : vector<8x128xf32>
    %1320 = vector.broadcast %14 : f32 to vector<8x128xf32>
    %1321 = arith.mulf %1320, %1287 : vector<8x128xf32>
    %1322 = arith.addf %1315, %1317 : vector<8x128xf32>
    %1323 = arith.addf %1319, %1321 : vector<8x128xf32>
    %1324 = arith.addf %1322, %1323 : vector<8x128xf32>
    %1325 = arith.addf %1324, %30 : vector<8x128xf32>
    %1326 = math.tanh %1325 : vector<8x128xf32>
    %1327 = vector.broadcast %3 : f32 to vector<8x128xf32>
    %1328 = arith.mulf %1327, %1248 : vector<8x128xf32>
    %1329 = vector.broadcast %7 : f32 to vector<8x128xf32>
    %1330 = arith.mulf %1329, %1261 : vector<8x128xf32>
    %1331 = vector.broadcast %11 : f32 to vector<8x128xf32>
    %1332 = arith.mulf %1331, %1274 : vector<8x128xf32>
    %1333 = vector.broadcast %15 : f32 to vector<8x128xf32>
    %1334 = arith.mulf %1333, %1287 : vector<8x128xf32>
    %1335 = arith.addf %1328, %1330 : vector<8x128xf32>
    %1336 = arith.addf %1332, %1334 : vector<8x128xf32>
    %1337 = arith.addf %1335, %1336 : vector<8x128xf32>
    %1338 = arith.addf %1337, %35 : vector<8x128xf32>
    %1339 = math.tanh %1338 : vector<8x128xf32>
    %c25_i32 = arith.constant 25 : i32
    %1340 = vector.broadcast %0 : f32 to vector<8x128xf32>
    %1341 = arith.mulf %1340, %1300 : vector<8x128xf32>
    %1342 = vector.broadcast %4 : f32 to vector<8x128xf32>
    %1343 = arith.mulf %1342, %1313 : vector<8x128xf32>
    %1344 = vector.broadcast %8 : f32 to vector<8x128xf32>
    %1345 = arith.mulf %1344, %1326 : vector<8x128xf32>
    %1346 = vector.broadcast %12 : f32 to vector<8x128xf32>
    %1347 = arith.mulf %1346, %1339 : vector<8x128xf32>
    %1348 = arith.addf %1341, %1343 : vector<8x128xf32>
    %1349 = arith.addf %1345, %1347 : vector<8x128xf32>
    %1350 = arith.addf %1348, %1349 : vector<8x128xf32>
    %1351 = arith.addf %1350, %20 : vector<8x128xf32>
    %1352 = math.tanh %1351 : vector<8x128xf32>
    %1353 = vector.broadcast %1 : f32 to vector<8x128xf32>
    %1354 = arith.mulf %1353, %1300 : vector<8x128xf32>
    %1355 = vector.broadcast %5 : f32 to vector<8x128xf32>
    %1356 = arith.mulf %1355, %1313 : vector<8x128xf32>
    %1357 = vector.broadcast %9 : f32 to vector<8x128xf32>
    %1358 = arith.mulf %1357, %1326 : vector<8x128xf32>
    %1359 = vector.broadcast %13 : f32 to vector<8x128xf32>
    %1360 = arith.mulf %1359, %1339 : vector<8x128xf32>
    %1361 = arith.addf %1354, %1356 : vector<8x128xf32>
    %1362 = arith.addf %1358, %1360 : vector<8x128xf32>
    %1363 = arith.addf %1361, %1362 : vector<8x128xf32>
    %1364 = arith.addf %1363, %25 : vector<8x128xf32>
    %1365 = math.tanh %1364 : vector<8x128xf32>
    %1366 = vector.broadcast %2 : f32 to vector<8x128xf32>
    %1367 = arith.mulf %1366, %1300 : vector<8x128xf32>
    %1368 = vector.broadcast %6 : f32 to vector<8x128xf32>
    %1369 = arith.mulf %1368, %1313 : vector<8x128xf32>
    %1370 = vector.broadcast %10 : f32 to vector<8x128xf32>
    %1371 = arith.mulf %1370, %1326 : vector<8x128xf32>
    %1372 = vector.broadcast %14 : f32 to vector<8x128xf32>
    %1373 = arith.mulf %1372, %1339 : vector<8x128xf32>
    %1374 = arith.addf %1367, %1369 : vector<8x128xf32>
    %1375 = arith.addf %1371, %1373 : vector<8x128xf32>
    %1376 = arith.addf %1374, %1375 : vector<8x128xf32>
    %1377 = arith.addf %1376, %30 : vector<8x128xf32>
    %1378 = math.tanh %1377 : vector<8x128xf32>
    %1379 = vector.broadcast %3 : f32 to vector<8x128xf32>
    %1380 = arith.mulf %1379, %1300 : vector<8x128xf32>
    %1381 = vector.broadcast %7 : f32 to vector<8x128xf32>
    %1382 = arith.mulf %1381, %1313 : vector<8x128xf32>
    %1383 = vector.broadcast %11 : f32 to vector<8x128xf32>
    %1384 = arith.mulf %1383, %1326 : vector<8x128xf32>
    %1385 = vector.broadcast %15 : f32 to vector<8x128xf32>
    %1386 = arith.mulf %1385, %1339 : vector<8x128xf32>
    %1387 = arith.addf %1380, %1382 : vector<8x128xf32>
    %1388 = arith.addf %1384, %1386 : vector<8x128xf32>
    %1389 = arith.addf %1387, %1388 : vector<8x128xf32>
    %1390 = arith.addf %1389, %35 : vector<8x128xf32>
    %1391 = math.tanh %1390 : vector<8x128xf32>
    %c26_i32 = arith.constant 26 : i32
    %1392 = vector.broadcast %0 : f32 to vector<8x128xf32>
    %1393 = arith.mulf %1392, %1352 : vector<8x128xf32>
    %1394 = vector.broadcast %4 : f32 to vector<8x128xf32>
    %1395 = arith.mulf %1394, %1365 : vector<8x128xf32>
    %1396 = vector.broadcast %8 : f32 to vector<8x128xf32>
    %1397 = arith.mulf %1396, %1378 : vector<8x128xf32>
    %1398 = vector.broadcast %12 : f32 to vector<8x128xf32>
    %1399 = arith.mulf %1398, %1391 : vector<8x128xf32>
    %1400 = arith.addf %1393, %1395 : vector<8x128xf32>
    %1401 = arith.addf %1397, %1399 : vector<8x128xf32>
    %1402 = arith.addf %1400, %1401 : vector<8x128xf32>
    %1403 = arith.addf %1402, %20 : vector<8x128xf32>
    %1404 = math.tanh %1403 : vector<8x128xf32>
    %1405 = vector.broadcast %1 : f32 to vector<8x128xf32>
    %1406 = arith.mulf %1405, %1352 : vector<8x128xf32>
    %1407 = vector.broadcast %5 : f32 to vector<8x128xf32>
    %1408 = arith.mulf %1407, %1365 : vector<8x128xf32>
    %1409 = vector.broadcast %9 : f32 to vector<8x128xf32>
    %1410 = arith.mulf %1409, %1378 : vector<8x128xf32>
    %1411 = vector.broadcast %13 : f32 to vector<8x128xf32>
    %1412 = arith.mulf %1411, %1391 : vector<8x128xf32>
    %1413 = arith.addf %1406, %1408 : vector<8x128xf32>
    %1414 = arith.addf %1410, %1412 : vector<8x128xf32>
    %1415 = arith.addf %1413, %1414 : vector<8x128xf32>
    %1416 = arith.addf %1415, %25 : vector<8x128xf32>
    %1417 = math.tanh %1416 : vector<8x128xf32>
    %1418 = vector.broadcast %2 : f32 to vector<8x128xf32>
    %1419 = arith.mulf %1418, %1352 : vector<8x128xf32>
    %1420 = vector.broadcast %6 : f32 to vector<8x128xf32>
    %1421 = arith.mulf %1420, %1365 : vector<8x128xf32>
    %1422 = vector.broadcast %10 : f32 to vector<8x128xf32>
    %1423 = arith.mulf %1422, %1378 : vector<8x128xf32>
    %1424 = vector.broadcast %14 : f32 to vector<8x128xf32>
    %1425 = arith.mulf %1424, %1391 : vector<8x128xf32>
    %1426 = arith.addf %1419, %1421 : vector<8x128xf32>
    %1427 = arith.addf %1423, %1425 : vector<8x128xf32>
    %1428 = arith.addf %1426, %1427 : vector<8x128xf32>
    %1429 = arith.addf %1428, %30 : vector<8x128xf32>
    %1430 = math.tanh %1429 : vector<8x128xf32>
    %1431 = vector.broadcast %3 : f32 to vector<8x128xf32>
    %1432 = arith.mulf %1431, %1352 : vector<8x128xf32>
    %1433 = vector.broadcast %7 : f32 to vector<8x128xf32>
    %1434 = arith.mulf %1433, %1365 : vector<8x128xf32>
    %1435 = vector.broadcast %11 : f32 to vector<8x128xf32>
    %1436 = arith.mulf %1435, %1378 : vector<8x128xf32>
    %1437 = vector.broadcast %15 : f32 to vector<8x128xf32>
    %1438 = arith.mulf %1437, %1391 : vector<8x128xf32>
    %1439 = arith.addf %1432, %1434 : vector<8x128xf32>
    %1440 = arith.addf %1436, %1438 : vector<8x128xf32>
    %1441 = arith.addf %1439, %1440 : vector<8x128xf32>
    %1442 = arith.addf %1441, %35 : vector<8x128xf32>
    %1443 = math.tanh %1442 : vector<8x128xf32>
    %c27_i32 = arith.constant 27 : i32
    %1444 = vector.broadcast %0 : f32 to vector<8x128xf32>
    %1445 = arith.mulf %1444, %1404 : vector<8x128xf32>
    %1446 = vector.broadcast %4 : f32 to vector<8x128xf32>
    %1447 = arith.mulf %1446, %1417 : vector<8x128xf32>
    %1448 = vector.broadcast %8 : f32 to vector<8x128xf32>
    %1449 = arith.mulf %1448, %1430 : vector<8x128xf32>
    %1450 = vector.broadcast %12 : f32 to vector<8x128xf32>
    %1451 = arith.mulf %1450, %1443 : vector<8x128xf32>
    %1452 = arith.addf %1445, %1447 : vector<8x128xf32>
    %1453 = arith.addf %1449, %1451 : vector<8x128xf32>
    %1454 = arith.addf %1452, %1453 : vector<8x128xf32>
    %1455 = arith.addf %1454, %20 : vector<8x128xf32>
    %1456 = math.tanh %1455 : vector<8x128xf32>
    %1457 = vector.broadcast %1 : f32 to vector<8x128xf32>
    %1458 = arith.mulf %1457, %1404 : vector<8x128xf32>
    %1459 = vector.broadcast %5 : f32 to vector<8x128xf32>
    %1460 = arith.mulf %1459, %1417 : vector<8x128xf32>
    %1461 = vector.broadcast %9 : f32 to vector<8x128xf32>
    %1462 = arith.mulf %1461, %1430 : vector<8x128xf32>
    %1463 = vector.broadcast %13 : f32 to vector<8x128xf32>
    %1464 = arith.mulf %1463, %1443 : vector<8x128xf32>
    %1465 = arith.addf %1458, %1460 : vector<8x128xf32>
    %1466 = arith.addf %1462, %1464 : vector<8x128xf32>
    %1467 = arith.addf %1465, %1466 : vector<8x128xf32>
    %1468 = arith.addf %1467, %25 : vector<8x128xf32>
    %1469 = math.tanh %1468 : vector<8x128xf32>
    %1470 = vector.broadcast %2 : f32 to vector<8x128xf32>
    %1471 = arith.mulf %1470, %1404 : vector<8x128xf32>
    %1472 = vector.broadcast %6 : f32 to vector<8x128xf32>
    %1473 = arith.mulf %1472, %1417 : vector<8x128xf32>
    %1474 = vector.broadcast %10 : f32 to vector<8x128xf32>
    %1475 = arith.mulf %1474, %1430 : vector<8x128xf32>
    %1476 = vector.broadcast %14 : f32 to vector<8x128xf32>
    %1477 = arith.mulf %1476, %1443 : vector<8x128xf32>
    %1478 = arith.addf %1471, %1473 : vector<8x128xf32>
    %1479 = arith.addf %1475, %1477 : vector<8x128xf32>
    %1480 = arith.addf %1478, %1479 : vector<8x128xf32>
    %1481 = arith.addf %1480, %30 : vector<8x128xf32>
    %1482 = math.tanh %1481 : vector<8x128xf32>
    %1483 = vector.broadcast %3 : f32 to vector<8x128xf32>
    %1484 = arith.mulf %1483, %1404 : vector<8x128xf32>
    %1485 = vector.broadcast %7 : f32 to vector<8x128xf32>
    %1486 = arith.mulf %1485, %1417 : vector<8x128xf32>
    %1487 = vector.broadcast %11 : f32 to vector<8x128xf32>
    %1488 = arith.mulf %1487, %1430 : vector<8x128xf32>
    %1489 = vector.broadcast %15 : f32 to vector<8x128xf32>
    %1490 = arith.mulf %1489, %1443 : vector<8x128xf32>
    %1491 = arith.addf %1484, %1486 : vector<8x128xf32>
    %1492 = arith.addf %1488, %1490 : vector<8x128xf32>
    %1493 = arith.addf %1491, %1492 : vector<8x128xf32>
    %1494 = arith.addf %1493, %35 : vector<8x128xf32>
    %1495 = math.tanh %1494 : vector<8x128xf32>
    %c28_i32 = arith.constant 28 : i32
    %1496 = vector.broadcast %0 : f32 to vector<8x128xf32>
    %1497 = arith.mulf %1496, %1456 : vector<8x128xf32>
    %1498 = vector.broadcast %4 : f32 to vector<8x128xf32>
    %1499 = arith.mulf %1498, %1469 : vector<8x128xf32>
    %1500 = vector.broadcast %8 : f32 to vector<8x128xf32>
    %1501 = arith.mulf %1500, %1482 : vector<8x128xf32>
    %1502 = vector.broadcast %12 : f32 to vector<8x128xf32>
    %1503 = arith.mulf %1502, %1495 : vector<8x128xf32>
    %1504 = arith.addf %1497, %1499 : vector<8x128xf32>
    %1505 = arith.addf %1501, %1503 : vector<8x128xf32>
    %1506 = arith.addf %1504, %1505 : vector<8x128xf32>
    %1507 = arith.addf %1506, %20 : vector<8x128xf32>
    %1508 = math.tanh %1507 : vector<8x128xf32>
    %1509 = vector.broadcast %1 : f32 to vector<8x128xf32>
    %1510 = arith.mulf %1509, %1456 : vector<8x128xf32>
    %1511 = vector.broadcast %5 : f32 to vector<8x128xf32>
    %1512 = arith.mulf %1511, %1469 : vector<8x128xf32>
    %1513 = vector.broadcast %9 : f32 to vector<8x128xf32>
    %1514 = arith.mulf %1513, %1482 : vector<8x128xf32>
    %1515 = vector.broadcast %13 : f32 to vector<8x128xf32>
    %1516 = arith.mulf %1515, %1495 : vector<8x128xf32>
    %1517 = arith.addf %1510, %1512 : vector<8x128xf32>
    %1518 = arith.addf %1514, %1516 : vector<8x128xf32>
    %1519 = arith.addf %1517, %1518 : vector<8x128xf32>
    %1520 = arith.addf %1519, %25 : vector<8x128xf32>
    %1521 = math.tanh %1520 : vector<8x128xf32>
    %1522 = vector.broadcast %2 : f32 to vector<8x128xf32>
    %1523 = arith.mulf %1522, %1456 : vector<8x128xf32>
    %1524 = vector.broadcast %6 : f32 to vector<8x128xf32>
    %1525 = arith.mulf %1524, %1469 : vector<8x128xf32>
    %1526 = vector.broadcast %10 : f32 to vector<8x128xf32>
    %1527 = arith.mulf %1526, %1482 : vector<8x128xf32>
    %1528 = vector.broadcast %14 : f32 to vector<8x128xf32>
    %1529 = arith.mulf %1528, %1495 : vector<8x128xf32>
    %1530 = arith.addf %1523, %1525 : vector<8x128xf32>
    %1531 = arith.addf %1527, %1529 : vector<8x128xf32>
    %1532 = arith.addf %1530, %1531 : vector<8x128xf32>
    %1533 = arith.addf %1532, %30 : vector<8x128xf32>
    %1534 = math.tanh %1533 : vector<8x128xf32>
    %1535 = vector.broadcast %3 : f32 to vector<8x128xf32>
    %1536 = arith.mulf %1535, %1456 : vector<8x128xf32>
    %1537 = vector.broadcast %7 : f32 to vector<8x128xf32>
    %1538 = arith.mulf %1537, %1469 : vector<8x128xf32>
    %1539 = vector.broadcast %11 : f32 to vector<8x128xf32>
    %1540 = arith.mulf %1539, %1482 : vector<8x128xf32>
    %1541 = vector.broadcast %15 : f32 to vector<8x128xf32>
    %1542 = arith.mulf %1541, %1495 : vector<8x128xf32>
    %1543 = arith.addf %1536, %1538 : vector<8x128xf32>
    %1544 = arith.addf %1540, %1542 : vector<8x128xf32>
    %1545 = arith.addf %1543, %1544 : vector<8x128xf32>
    %1546 = arith.addf %1545, %35 : vector<8x128xf32>
    %1547 = math.tanh %1546 : vector<8x128xf32>
    %c29_i32 = arith.constant 29 : i32
    %1548 = vector.broadcast %0 : f32 to vector<8x128xf32>
    %1549 = arith.mulf %1548, %1508 : vector<8x128xf32>
    %1550 = vector.broadcast %4 : f32 to vector<8x128xf32>
    %1551 = arith.mulf %1550, %1521 : vector<8x128xf32>
    %1552 = vector.broadcast %8 : f32 to vector<8x128xf32>
    %1553 = arith.mulf %1552, %1534 : vector<8x128xf32>
    %1554 = vector.broadcast %12 : f32 to vector<8x128xf32>
    %1555 = arith.mulf %1554, %1547 : vector<8x128xf32>
    %1556 = arith.addf %1549, %1551 : vector<8x128xf32>
    %1557 = arith.addf %1553, %1555 : vector<8x128xf32>
    %1558 = arith.addf %1556, %1557 : vector<8x128xf32>
    %1559 = arith.addf %1558, %20 : vector<8x128xf32>
    %1560 = math.tanh %1559 : vector<8x128xf32>
    %1561 = vector.broadcast %1 : f32 to vector<8x128xf32>
    %1562 = arith.mulf %1561, %1508 : vector<8x128xf32>
    %1563 = vector.broadcast %5 : f32 to vector<8x128xf32>
    %1564 = arith.mulf %1563, %1521 : vector<8x128xf32>
    %1565 = vector.broadcast %9 : f32 to vector<8x128xf32>
    %1566 = arith.mulf %1565, %1534 : vector<8x128xf32>
    %1567 = vector.broadcast %13 : f32 to vector<8x128xf32>
    %1568 = arith.mulf %1567, %1547 : vector<8x128xf32>
    %1569 = arith.addf %1562, %1564 : vector<8x128xf32>
    %1570 = arith.addf %1566, %1568 : vector<8x128xf32>
    %1571 = arith.addf %1569, %1570 : vector<8x128xf32>
    %1572 = arith.addf %1571, %25 : vector<8x128xf32>
    %1573 = math.tanh %1572 : vector<8x128xf32>
    %1574 = vector.broadcast %2 : f32 to vector<8x128xf32>
    %1575 = arith.mulf %1574, %1508 : vector<8x128xf32>
    %1576 = vector.broadcast %6 : f32 to vector<8x128xf32>
    %1577 = arith.mulf %1576, %1521 : vector<8x128xf32>
    %1578 = vector.broadcast %10 : f32 to vector<8x128xf32>
    %1579 = arith.mulf %1578, %1534 : vector<8x128xf32>
    %1580 = vector.broadcast %14 : f32 to vector<8x128xf32>
    %1581 = arith.mulf %1580, %1547 : vector<8x128xf32>
    %1582 = arith.addf %1575, %1577 : vector<8x128xf32>
    %1583 = arith.addf %1579, %1581 : vector<8x128xf32>
    %1584 = arith.addf %1582, %1583 : vector<8x128xf32>
    %1585 = arith.addf %1584, %30 : vector<8x128xf32>
    %1586 = math.tanh %1585 : vector<8x128xf32>
    %1587 = vector.broadcast %3 : f32 to vector<8x128xf32>
    %1588 = arith.mulf %1587, %1508 : vector<8x128xf32>
    %1589 = vector.broadcast %7 : f32 to vector<8x128xf32>
    %1590 = arith.mulf %1589, %1521 : vector<8x128xf32>
    %1591 = vector.broadcast %11 : f32 to vector<8x128xf32>
    %1592 = arith.mulf %1591, %1534 : vector<8x128xf32>
    %1593 = vector.broadcast %15 : f32 to vector<8x128xf32>
    %1594 = arith.mulf %1593, %1547 : vector<8x128xf32>
    %1595 = arith.addf %1588, %1590 : vector<8x128xf32>
    %1596 = arith.addf %1592, %1594 : vector<8x128xf32>
    %1597 = arith.addf %1595, %1596 : vector<8x128xf32>
    %1598 = arith.addf %1597, %35 : vector<8x128xf32>
    %1599 = math.tanh %1598 : vector<8x128xf32>
    %c0_47 = arith.constant 0 : index
    %c0_48 = arith.constant 0 : index
    %c0_49 = arith.constant 0 : index
    %1600 = vector.load %arg4[%c0_47, %c0_48, %c0_49] : memref<4x8x128xf32, #tpu.memory_space<vmem>>, vector<1x8x128xf32>
    %1601 = vector.shape_cast %1600 : vector<1x8x128xf32> to vector<8x128xf32>
    %1602 = vector.shape_cast %1560 : vector<8x128xf32> to vector<1x8x128xf32>
    tpu.vector_store %arg4[%c0_47, %c0_48, %c0_49], %1602 {strides = array<i32>} : memref<4x8x128xf32, #tpu.memory_space<vmem>>, vector<1x8x128xf32>,
    %c1_50 = arith.constant 1 : index
    %c0_51 = arith.constant 0 : index
    %c0_52 = arith.constant 0 : index
    %1603 = vector.load %arg4[%c1_50, %c0_51, %c0_52] : memref<4x8x128xf32, #tpu.memory_space<vmem>>, vector<1x8x128xf32>
    %1604 = vector.shape_cast %1603 : vector<1x8x128xf32> to vector<8x128xf32>
    %1605 = vector.shape_cast %1573 : vector<8x128xf32> to vector<1x8x128xf32>
    tpu.vector_store %arg4[%c1_50, %c0_51, %c0_52], %1605 {strides = array<i32>} : memref<4x8x128xf32, #tpu.memory_space<vmem>>, vector<1x8x128xf32>,
    %c2_53 = arith.constant 2 : index
    %c0_54 = arith.constant 0 : index
    %c0_55 = arith.constant 0 : index
    %1606 = vector.load %arg4[%c2_53, %c0_54, %c0_55] : memref<4x8x128xf32, #tpu.memory_space<vmem>>, vector<1x8x128xf32>
    %1607 = vector.shape_cast %1606 : vector<1x8x128xf32> to vector<8x128xf32>
    %1608 = vector.shape_cast %1586 : vector<8x128xf32> to vector<1x8x128xf32>
    tpu.vector_store %arg4[%c2_53, %c0_54, %c0_55], %1608 {strides = array<i32>} : memref<4x8x128xf32, #tpu.memory_space<vmem>>, vector<1x8x128xf32>,
    %c3_56 = arith.constant 3 : index
    %c0_57 = arith.constant 0 : index
    %c0_58 = arith.constant 0 : index
    %1609 = vector.load %arg4[%c3_56, %c0_57, %c0_58] : memref<4x8x128xf32, #tpu.memory_space<vmem>>, vector<1x8x128xf32>
    %1610 = vector.shape_cast %1609 : vector<1x8x128xf32> to vector<8x128xf32>
    %1611 = vector.shape_cast %1599 : vector<8x128xf32> to vector<1x8x128xf32>
    tpu.vector_store %arg4[%c3_56, %c0_57, %c0_58], %1611 {strides = array<i32>} : memref<4x8x128xf32, #tpu.memory_space<vmem>>, vector<1x8x128xf32>,
    return
  }
  func.func @transform_0(%arg0: i32) -> (i32, i32) {
    %c0_i32 = arith.constant 0 : i32
    %c0_i32_0 = arith.constant 0 : i32
    %c0_i32_1 = arith.constant 0 : i32
    return %c0_i32, %c0_i32_0 : i32, i32
  }
  func.func @transform_1(%arg0: i32) -> i32 {
    %c0_i32 = arith.constant 0 : i32
    %c0_i32_0 = arith.constant 0 : i32
    return %c0_i32 : i32
  }
  func.func @transform_2(%arg0: i32) -> (i32, i32, i32) {
    %c0_i32 = arith.constant 0 : i32
    %c0_i32_0 = arith.constant 0 : i32
    %c0_i32_1 = arith.constant 0 : i32
    return %c0_i32, %c0_i32_0, %arg0 : i32, i32, i32
  }
  func.func @transform_3(%arg0: i32) -> (i32, i32, i32) {
    %c0_i32 = arith.constant 0 : i32
    %c0_i32_0 = arith.constant 0 : i32
    %c0_i32_1 = arith.constant 0 : i32
    return %c0_i32, %c0_i32_0, %arg0 : i32, i32, i32
  }
}

</mosaic_0001>

<llo_original>
// kernel: tpu_custom_call.1
$region0: #{tpu_custom_call.1}
  #allocation0 [shape = 'u32[]', space=smem, size = 0x4, offset = 0x4, fixed_abs, tag = 'smem constant byte address 0x4 - core index']
  #allocation1 [shape = 'u32[144,128]{1,0:T(1,128)}', space=vmem, size = 0x12000, scoped, tag = 'internal scratch']
  %s0 = inlined_call_operand.hbm [shape: f32[4,4], index: 0, kind: input, shape index: {}]
  %s1 = inlined_call_operand.vmem [shape: f32[4], index: 1, kind: input, shape index: {}]
  %s2 = inlined_call_operand.hbm [shape: f32[4,8,128], index: 2, kind: input, shape index: {}]
  %s3 = inlined_call_operand.hbm [shape: f32[4,8,128], index: 3, kind: output, shape index: {}]
  %s4 = sld [smem:[#allocation0]]
  $region34: #{tpu_custom_call.1} parent=0
    _
  %s6 = ssub.s32 1, %s4
  %s7 = scalar_select 0, %s6, %s4
  $region1: #{tpu_custom_call.1} parent=0
    #allocation2 [shape = 'u8[2048]{0}', space=smem, size = 0x800, scoped, tag = 'input window, operand 0, single buffered']
    #allocation3 [shape = 's32[1]{0}', space=sflag, size = 0x4, scoped, tag = 'scoped memory for tpu_custom_call.1']
    #allocation4 [shape = 's32[1]{0}', space=sflag, size = 0x4, scoped, tag = 'scoped memory for tpu_custom_call.1']
    #allocation5 [shape = 's32[1]{0}', space=sflag, size = 0x4, scoped, tag = 'scoped memory for tpu_custom_call.1']
    #allocation6 [shape = 's32[1]{0}', space=sflag, size = 0x4, scoped, tag = 'scoped memory for tpu_custom_call.1']
    #allocation7 [shape = 'u8[512]{0}', space=smem, size = 0x200, scoped, tag = 'input window, operand 1, single buffered']
    #allocation8 [shape = 'u8[16384]{0}', space=vmem, size = 0x4000, scoped, tag = 'input window, operand 2, single buffered']
    #allocation9 [shape = 'u8[16384]{0}', space=vmem, size = 0x4000, scoped, tag = 'output window, operand 0, single buffered']
    %8 = vsyncpa [#allocation5], 0
    %9 = vsyncpa [#allocation6], 0
    %10 = vsyncpa [#allocation3], 0
    %11 = vsyncpa [#allocation4], 0
    // Predicated region
    $region2: #{tpu_custom_call.1} parent=1 // pred_check
      _
    $region3: #{tpu_custom_call.1} parent=1 // pred_check_branch
      %13 = sbr.rel (0) target = $region5
    $region4: #{tpu_custom_call.1} parent=1 // pred_region
      %s15 = ssub.s32 64, 64
      %16 = vsyncadd [#allocation5], %s15
      %19 = dma.hbm_to_smem %s0, 64, [#allocation2], [#allocation5]
    $region5: #{tpu_custom_call.1} parent=1 // pred_fallthru
      _
    // Predicated region
    $region6: #{tpu_custom_call.1} parent=1 // pred_check
      _
    $region7: #{tpu_custom_call.1} parent=1 // pred_check_branch
      %21 = sbr.rel (0) target = $region9
    $region8: #{tpu_custom_call.1} parent=1 // pred_region
      %s23 = ssub.s32 16, 16
      %24 = vsyncadd [#allocation6], %s23
      %s26 = sshll.u32 %s1, 4
      %s27 = int_to_ptr.vmem [resolvable:$true] %s26
      %29 = dma.vmem_to_smem %s27, 16, [#allocation7], [#allocation6]
    $region9: #{tpu_custom_call.1} parent=1 // pred_fallthru
      _
    // Predicated region
    $region10: #{tpu_custom_call.1} parent=1 // pred_check
      _
    $region11: #{tpu_custom_call.1} parent=1 // pred_check_branch
      %31 = sbr.rel (0) target = $region13
    $region12: #{tpu_custom_call.1} parent=1 // pred_region
      %s33 = ssub.s32 512, 512
      %34 = vsyncadd [#allocation3], %s33
      %s35 = sshll.u32 [#allocation8], 4
      %s36 = int_to_ptr.vmem [resolvable:$true] %s35
      %41 = dma.hbm_to_vmem [thread:$0]  %s2, 512, %s36, [#allocation3], 128, 128, 8
    $region13: #{tpu_custom_call.1} parent=1 // pred_fallthru
      _
    // Predicated region
    $region14: #{tpu_custom_call.1} parent=1 // pred_check
      _
    $region15: #{tpu_custom_call.1} parent=1 // pred_check_branch
      %43 = sbr.rel (0) target = $region17
    $region16: #{tpu_custom_call.1} parent=1 // pred_region
      %44 = dma.done [#allocation5], 64
    $region17: #{tpu_custom_call.1} parent=1 // pred_fallthru
      _
    // Predicated region
    $region18: #{tpu_custom_call.1} parent=1 // pred_check
      _
    $region19: #{tpu_custom_call.1} parent=1 // pred_check_branch
      %46 = sbr.rel (0) target = $region21
    $region20: #{tpu_custom_call.1} parent=1 // pred_region
      %47 = dma.done [#allocation6], 16
    $region21: #{tpu_custom_call.1} parent=1 // pred_fallthru
      _
    // Predicated region
    $region22: #{tpu_custom_call.1} parent=1 // pred_check
      _
    $region23: #{tpu_custom_call.1} parent=1 // pred_check_branch
      %49 = sbr.rel (0) target = $region25
    $region24: #{tpu_custom_call.1} parent=1 // pred_region
      %50 = dma.done [#allocation3], 512
    $region25: #{tpu_custom_call.1} parent=1 // pred_fallthru
      _
    %51 = sfence
    %s52 = sld [smem:[#allocation2]]
    %s53 = sld [smem:[#allocation2 + $0x1]]
    %s54 = sld [smem:[#allocation2 + $0x2]]
    %s55 = sld [smem:[#allocation2 + $0x3]]
    %s56 = sld [smem:[#allocation2 + $0x80]]
    %s57 = sld [smem:[#allocation2 + $0x81]]
    %s58 = sld [smem:[#allocation2 + $0x82]]
    %s59 = sld [smem:[#allocation2 + $0x83]]
    %s60 = sld [smem:[#allocation2 + $0x100]]
    %s61 = sld [smem:[#allocation2 + $0x101]]
    %s62 = sld [smem:[#allocation2 + $0x102]]
    %s63 = sld [smem:[#allocation2 + $0x103]]
    %s64 = sld [smem:[#allocation2 + $0x180]]
    %s65 = sld [smem:[#allocation2 + $0x181]]
    %s66 = sld [smem:[#allocation2 + $0x182]]
    %s67 = sld [smem:[#allocation2 + $0x183]]
    %v68 = vld [vmem:[#allocation8] sm:$0xff]
    %s69 = sld [smem:[#allocation7]]
    %v70 = vstv %s69
    %v71 = vadd.f32 %v68, %v70
    %s72 = scalar_lea.vmem [#allocation8], 8
    %v73 = vld [vmem:[%s72] sm:$0xff]
    %s74 = sld [smem:[#allocation7 + $0x1]]
    %v75 = vstv %s74
    %v76 = vadd.f32 %v73, %v75
    %s77 = scalar_lea.vmem [#allocation8], 16
    %v78 = vld [vmem:[%s77] sm:$0xff]
    %s79 = sld [smem:[#allocation7 + $0x2]]
    %v80 = vstv %s79
    %v81 = vadd.f32 %v78, %v80
    %s82 = scalar_lea.vmem [#allocation8], 24
    %v83 = vld [vmem:[%s82] sm:$0xff]
    %s84 = sld [smem:[#allocation7 + $0x3]]
    %v85 = vstv %s84
    %v86 = vadd.f32 %v83, %v85
    %v87 = vstv %s52
    %v88 = vmul.f32 %v87, 0.0
    %v89 = vstv %s56
    %v90 = vmul.f32 %v89, 0.0
    %v91 = vstv %s60
    %v92 = vmul.f32 %v91, 0.0
    %v93 = vstv %s64
    %v94 = vmul.f32 %v93, 0.0
    %v95 = vadd.f32 %v88, %v90
    %v96 = vadd.f32 %v92, %v94
    %v97 = vadd.f32 %v95, %v96
    %v98 = vadd.f32 %v97, %v71
    %v99 = vtanh.pop %v98
    %v100 = vstv %s53
    %v101 = vmul.f32 %v100, 0.0
    %v102 = vstv %s57
    %v103 = vmul.f32 %v102, 0.0
    %v104 = vstv %s61
    %v105 = vmul.f32 %v104, 0.0
    %v106 = vstv %s65
    %v107 = vmul.f32 %v106, 0.0
    %v108 = vadd.f32 %v101, %v103
    %v109 = vadd.f32 %v105, %v107
    %v110 = vadd.f32 %v108, %v109
    %v111 = vadd.f32 %v110, %v76
    %v112 = vtanh.pop %v111
    %v113 = vstv %s54
    %v114 = vmul.f32 %v113, 0.0
    %v115 = vstv %s58
    %v116 = vmul.f32 %v115, 0.0
    %v117 = vstv %s62
    %v118 = vmul.f32 %v117, 0.0
    %v119 = vstv %s66
    %v120 = vmul.f32 %v119, 0.0
    %v121 = vadd.f32 %v114, %v116
    %v122 = vadd.f32 %v118, %v120
    %v123 = vadd.f32 %v121, %v122
    %v124 = vadd.f32 %v123, %v81
    %v125 = vtanh.pop %v124
    %v126 = vstv %s55
    %v127 = vmul.f32 %v126, 0.0
    %v128 = vstv %s59
    %v129 = vmul.f32 %v128, 0.0
    %v130 = vstv %s63
    %v131 = vmul.f32 %v130, 0.0
    %v132 = vstv %s67
    %v133 = vmul.f32 %v132, 0.0
    %v134 = vadd.f32 %v127, %v129
    %v135 = vadd.f32 %v131, %v133
    %v136 = vadd.f32 %v134, %v135
    %v137 = vadd.f32 %v136, %v86
    %v138 = vtanh.pop %v137
    %v139 = vmul.f32 %v87, %v99
    %v140 = vmul.f32 %v89, %v112
    %v141 = vmul.f32 %v91, %v125
    %v142 = vmul.f32 %v93, %v138
    %v143 = vadd.f32 %v139, %v140
    %v144 = vadd.f32 %v141, %v142
    %v145 = vadd.f32 %v143, %v144
    %v146 = vadd.f32 %v145, %v71
    %v147 = vtanh.pop %v146
    %v148 = vmul.f32 %v100, %v99
    %v149 = vmul.f32 %v102, %v112
    %v150 = vmul.f32 %v104, %v125
    %v151 = vmul.f32 %v106, %v138
    %v152 = vadd.f32 %v148, %v149
    %v153 = vadd.f32 %v150, %v151
    %v154 = vadd.f32 %v152, %v153
    %v155 = vadd.f32 %v154, %v76
    %v156 = vtanh.pop %v155
    %v157 = vmul.f32 %v113, %v99
    %v158 = vmul.f32 %v115, %v112
    %v159 = vmul.f32 %v117, %v125
    %v160 = vmul.f32 %v119, %v138
    %v161 = vadd.f32 %v157, %v158
    %v162 = vadd.f32 %v159, %v160
    %v163 = vadd.f32 %v161, %v162
    %v164 = vadd.f32 %v163, %v81
    %v165 = vtanh.pop %v164
    %v166 = vmul.f32 %v126, %v99
    %v167 = vmul.f32 %v128, %v112
    %v168 = vmul.f32 %v130, %v125
    %v169 = vmul.f32 %v132, %v138
    %v170 = vadd.f32 %v166, %v167
    %v171 = vadd.f32 %v168, %v169
    %v172 = vadd.f32 %v170, %v171
    %v173 = vadd.f32 %v172, %v86
    %v174 = vtanh.pop %v173
    %v175 = vmul.f32 %v87, %v147
    %v176 = vmul.f32 %v89, %v156
    %v177 = vmul.f32 %v91, %v165
    %v178 = vmul.f32 %v93, %v174
    %v179 = vadd.f32 %v175, %v176
    %v180 = vadd.f32 %v177, %v178
    %v181 = vadd.f32 %v179, %v180
    %v182 = vadd.f32 %v181, %v71
    %v183 = vtanh.pop %v182
    %v184 = vmul.f32 %v100, %v147
    %v185 = vmul.f32 %v102, %v156
    %v186 = vmul.f32 %v104, %v165
    %v187 = vmul.f32 %v106, %v174
    %v188 = vadd.f32 %v184, %v185
    %v189 = vadd.f32 %v186, %v187
    %v190 = vadd.f32 %v188, %v189
    %v191 = vadd.f32 %v190, %v76
    %v192 = vtanh.pop %v191
    %v193 = vmul.f32 %v113, %v147
    %v194 = vmul.f32 %v115, %v156
    %v195 = vmul.f32 %v117, %v165
    %v196 = vmul.f32 %v119, %v174
    %v197 = vadd.f32 %v193, %v194
    %v198 = vadd.f32 %v195, %v196
    %v199 = vadd.f32 %v197, %v198
    %v200 = vadd.f32 %v199, %v81
    %v201 = vtanh.pop %v200
    %v202 = vmul.f32 %v126, %v147
    %v203 = vmul.f32 %v128, %v156
    %v204 = vmul.f32 %v130, %v165
    %v205 = vmul.f32 %v132, %v174
    %v206 = vadd.f32 %v202, %v203
    %v207 = vadd.f32 %v204, %v205
    %v208 = vadd.f32 %v206, %v207
    %v209 = vadd.f32 %v208, %v86
    %v210 = vtanh.pop %v209
    %v211 = vmul.f32 %v87, %v183
    %v212 = vmul.f32 %v89, %v192
    %v213 = vmul.f32 %v91, %v201
    %v214 = vmul.f32 %v93, %v210
    %v215 = vadd.f32 %v211, %v212
    %v216 = vadd.f32 %v213, %v214
    %v217 = vadd.f32 %v215, %v216
    %v218 = vadd.f32 %v217, %v71
    %v219 = vtanh.pop %v218
    %v220 = vmul.f32 %v100, %v183
    %v221 = vmul.f32 %v102, %v192
    %v222 = vmul.f32 %v104, %v201
    %v223 = vmul.f32 %v106, %v210
    %v224 = vadd.f32 %v220, %v221
    %v225 = vadd.f32 %v222, %v223
    %v226 = vadd.f32 %v224, %v225
    %v227 = vadd.f32 %v226, %v76
    %v228 = vtanh.pop %v227
    %v229 = vmul.f32 %v113, %v183
    %v230 = vmul.f32 %v115, %v192
    %v231 = vmul.f32 %v117, %v201
    %v232 = vmul.f32 %v119, %v210
    %v233 = vadd.f32 %v229, %v230
    %v234 = vadd.f32 %v231, %v232
    %v235 = vadd.f32 %v233, %v234
    %v236 = vadd.f32 %v235, %v81
    %v237 = vtanh.pop %v236
    %v238 = vmul.f32 %v126, %v183
    %v239 = vmul.f32 %v128, %v192
    %v240 = vmul.f32 %v130, %v201
    %v241 = vmul.f32 %v132, %v210
    %v242 = vadd.f32 %v238, %v239
    %v243 = vadd.f32 %v240, %v241
    %v244 = vadd.f32 %v242, %v243
    %v245 = vadd.f32 %v244, %v86
    %v246 = vtanh.pop %v245
    %v247 = vmul.f32 %v87, %v219
    %v248 = vmul.f32 %v89, %v228
    %v249 = vmul.f32 %v91, %v237
    %v250 = vmul.f32 %v93, %v246
    %v251 = vadd.f32 %v247, %v248
    %v252 = vadd.f32 %v249, %v250
    %v253 = vadd.f32 %v251, %v252
    %v254 = vadd.f32 %v253, %v71
    %v255 = vtanh.pop %v254
    %v256 = vmul.f32 %v100, %v219
    %v257 = vmul.f32 %v102, %v228
    %v258 = vmul.f32 %v104, %v237
    %v259 = vmul.f32 %v106, %v246
    %v260 = vadd.f32 %v256, %v257
    %v261 = vadd.f32 %v258, %v259
    %v262 = vadd.f32 %v260, %v261
    %v263 = vadd.f32 %v262, %v76
    %v264 = vtanh.pop %v263
    %v265 = vmul.f32 %v113, %v219
    %v266 = vmul.f32 %v115, %v228
    %v267 = vmul.f32 %v117, %v237
    %v268 = vmul.f32 %v119, %v246
    %v269 = vadd.f32 %v265, %v266
    %v270 = vadd.f32 %v267, %v268
    %v271 = vadd.f32 %v269, %v270
    %v272 = vadd.f32 %v271, %v81
    %v273 = vtanh.pop %v272
    %v274 = vmul.f32 %v126, %v219
    %v275 = vmul.f32 %v128, %v228
    %v276 = vmul.f32 %v130, %v237
    %v277 = vmul.f32 %v132, %v246
    %v278 = vadd.f32 %v274, %v275
    %v279 = vadd.f32 %v276, %v277
    %v280 = vadd.f32 %v278, %v279
    %v281 = vadd.f32 %v280, %v86
    %v282 = vtanh.pop %v281
    %v283 = vmul.f32 %v87, %v255
    %v284 = vmul.f32 %v89, %v264
    %v285 = vmul.f32 %v91, %v273
    %v286 = vmul.f32 %v93, %v282
    %v287 = vadd.f32 %v283, %v284
    %v288 = vadd.f32 %v285, %v286
    %v289 = vadd.f32 %v287, %v288
    %v290 = vadd.f32 %v289, %v71
    %v291 = vtanh.pop %v290
    %v292 = vmul.f32 %v100, %v255
    %v293 = vmul.f32 %v102, %v264
    %v294 = vmul.f32 %v104, %v273
    %v295 = vmul.f32 %v106, %v282
    %v296 = vadd.f32 %v292, %v293
    %v297 = vadd.f32 %v294, %v295
    %v298 = vadd.f32 %v296, %v297
    %v299 = vadd.f32 %v298, %v76
    %v300 = vtanh.pop %v299
    %v301 = vmul.f32 %v113, %v255
    %v302 = vmul.f32 %v115, %v264
    %v303 = vmul.f32 %v117, %v273
    %v304 = vmul.f32 %v119, %v282
    %v305 = vadd.f32 %v301, %v302
    %v306 = vadd.f32 %v303, %v304
    %v307 = vadd.f32 %v305, %v306
    %v308 = vadd.f32 %v307, %v81
    %v309 = vtanh.pop %v308
    %v310 = vmul.f32 %v126, %v255
    %v311 = vmul.f32 %v128, %v264
    %v312 = vmul.f32 %v130, %v273
    %v313 = vmul.f32 %v132, %v282
    %v314 = vadd.f32 %v310, %v311
    %v315 = vadd.f32 %v312, %v313
    %v316 = vadd.f32 %v314, %v315
    %v317 = vadd.f32 %v316, %v86
    %v318 = vtanh.pop %v317
    %v319 = vmul.f32 %v87, %v291
    %v320 = vmul.f32 %v89, %v300
    %v321 = vmul.f32 %v91, %v309
    %v322 = vmul.f32 %v93, %v318
    %v323 = vadd.f32 %v319, %v320
    %v324 = vadd.f32 %v321, %v322
    %v325 = vadd.f32 %v323, %v324
    %v326 = vadd.f32 %v325, %v71
    %v327 = vtanh.pop %v326
    %v328 = vmul.f32 %v100, %v291
    %v329 = vmul.f32 %v102, %v300
    %v330 = vmul.f32 %v104, %v309
    %v331 = vmul.f32 %v106, %v318
    %v332 = vadd.f32 %v328, %v329
    %v333 = vadd.f32 %v330, %v331
    %v334 = vadd.f32 %v332, %v333
    %v335 = vadd.f32 %v334, %v76
    %v336 = vtanh.pop %v335
    %v337 = vmul.f32 %v113, %v291
    %v338 = vmul.f32 %v115, %v300
    %v339 = vmul.f32 %v117, %v309
    %v340 = vmul.f32 %v119, %v318
    %v341 = vadd.f32 %v337, %v338
    %v342 = vadd.f32 %v339, %v340
    %v343 = vadd.f32 %v341, %v342
    %v344 = vadd.f32 %v343, %v81
    %v345 = vtanh.pop %v344
    %v346 = vmul.f32 %v126, %v291
    %v347 = vmul.f32 %v128, %v300
    %v348 = vmul.f32 %v130, %v309
    %v349 = vmul.f32 %v132, %v318
    %v350 = vadd.f32 %v346, %v347
    %v351 = vadd.f32 %v348, %v349
    %v352 = vadd.f32 %v350, %v351
    %v353 = vadd.f32 %v352, %v86
    %v354 = vtanh.pop %v353
    %v355 = vmul.f32 %v87, %v327
    %v356 = vmul.f32 %v89, %v336
    %v357 = vmul.f32 %v91, %v345
    %v358 = vmul.f32 %v93, %v354
    %v359 = vadd.f32 %v355, %v356
    %v360 = vadd.f32 %v357, %v358
    %v361 = vadd.f32 %v359, %v360
    %v362 = vadd.f32 %v361, %v71
    %v363 = vtanh.pop %v362
    %v364 = vmul.f32 %v100, %v327
    %v365 = vmul.f32 %v102, %v336
    %v366 = vmul.f32 %v104, %v345
    %v367 = vmul.f32 %v106, %v354
    %v368 = vadd.f32 %v364, %v365
    %v369 = vadd.f32 %v366, %v367
    %v370 = vadd.f32 %v368, %v369
    %v371 = vadd.f32 %v370, %v76
    %v372 = vtanh.pop %v371
    %v373 = vmul.f32 %v113, %v327
    %v374 = vmul.f32 %v115, %v336
    %v375 = vmul.f32 %v117, %v345
    %v376 = vmul.f32 %v119, %v354
    %v377 = vadd.f32 %v373, %v374
    %v378 = vadd.f32 %v375, %v376
    %v379 = vadd.f32 %v377, %v378
    %v380 = vadd.f32 %v379, %v81
    %v381 = vtanh.pop %v380
    %v382 = vmul.f32 %v126, %v327
    %v383 = vmul.f32 %v128, %v336
    %v384 = vmul.f32 %v130, %v345
    %v385 = vmul.f32 %v132, %v354
    %v386 = vadd.f32 %v382, %v383
    %v387 = vadd.f32 %v384, %v385
    %v388 = vadd.f32 %v386, %v387
    %v389 = vadd.f32 %v388, %v86
    %v390 = vtanh.pop %v389
    %v391 = vmul.f32 %v87, %v363
    %v392 = vmul.f32 %v89, %v372
    %v393 = vmul.f32 %v91, %v381
    %v394 = vmul.f32 %v93, %v390
    %v395 = vadd.f32 %v391, %v392
    %v396 = vadd.f32 %v393, %v394
    %v397 = vadd.f32 %v395, %v396
    %v398 = vadd.f32 %v397, %v71
    %v399 = vtanh.pop %v398
    %v400 = vmul.f32 %v100, %v363
    %v401 = vmul.f32 %v102, %v372
    %v402 = vmul.f32 %v104, %v381
    %v403 = vmul.f32 %v106, %v390
    %v404 = vadd.f32 %v400, %v401
    %v405 = vadd.f32 %v402, %v403
    %v406 = vadd.f32 %v404, %v405
    %v407 = vadd.f32 %v406, %v76
    %v408 = vtanh.pop %v407
    %v409 = vmul.f32 %v113, %v363
    %v410 = vmul.f32 %v115, %v372
    %v411 = vmul.f32 %v117, %v381
    %v412 = vmul.f32 %v119, %v390
    %v413 = vadd.f32 %v409, %v410
    %v414 = vadd.f32 %v411, %v412
    %v415 = vadd.f32 %v413, %v414
    %v416 = vadd.f32 %v415, %v81
    %v417 = vtanh.pop %v416
    %v418 = vmul.f32 %v126, %v363
    %v419 = vmul.f32 %v128, %v372
    %v420 = vmul.f32 %v130, %v381
    %v421 = vmul.f32 %v132, %v390
    %v422 = vadd.f32 %v418, %v419
    %v423 = vadd.f32 %v420, %v421
    %v424 = vadd.f32 %v422, %v423
    %v425 = vadd.f32 %v424, %v86
    %v426 = vtanh.pop %v425
    %v427 = vmul.f32 %v87, %v399
    %v428 = vmul.f32 %v89, %v408
    %v429 = vmul.f32 %v91, %v417
    %v430 = vmul.f32 %v93, %v426
    %v431 = vadd.f32 %v427, %v428
    %v432 = vadd.f32 %v429, %v430
    %v433 = vadd.f32 %v431, %v432
    %v434 = vadd.f32 %v433, %v71
    %v435 = vtanh.pop %v434
    %v436 = vmul.f32 %v100, %v399
    %v437 = vmul.f32 %v102, %v408
    %v438 = vmul.f32 %v104, %v417
    %v439 = vmul.f32 %v106, %v426
    %v440 = vadd.f32 %v436, %v437
    %v441 = vadd.f32 %v438, %v439
    %v442 = vadd.f32 %v440, %v441
    %v443 = vadd.f32 %v442, %v76
    %v444 = vtanh.pop %v443
    %v445 = vmul.f32 %v113, %v399
    %v446 = vmul.f32 %v115, %v408
    %v447 = vmul.f32 %v117, %v417
    %v448 = vmul.f32 %v119, %v426
    %v449 = vadd.f32 %v445, %v446
    %v450 = vadd.f32 %v447, %v448
    %v451 = vadd.f32 %v449, %v450
    %v452 = vadd.f32 %v451, %v81
    %v453 = vtanh.pop %v452
    %v454 = vmul.f32 %v126, %v399
    %v455 = vmul.f32 %v128, %v408
    %v456 = vmul.f32 %v130, %v417
    %v457 = vmul.f32 %v132, %v426
    %v458 = vadd.f32 %v454, %v455
    %v459 = vadd.f32 %v456, %v457
    %v460 = vadd.f32 %v458, %v459
    %v461 = vadd.f32 %v460, %v86
    %v462 = vtanh.pop %v461
    %v463 = vmul.f32 %v87, %v435
    %v464 = vmul.f32 %v89, %v444
    %v465 = vmul.f32 %v91, %v453
    %v466 = vmul.f32 %v93, %v462
    %v467 = vadd.f32 %v463, %v464
    %v468 = vadd.f32 %v465, %v466
    %v469 = vadd.f32 %v467, %v468
    %v470 = vadd.f32 %v469, %v71
    %v471 = vtanh.pop %v470
    %v472 = vmul.f32 %v100, %v435
    %v473 = vmul.f32 %v102, %v444
    %v474 = vmul.f32 %v104, %v453
    %v475 = vmul.f32 %v106, %v462
    %v476 = vadd.f32 %v472, %v473
    %v477 = vadd.f32 %v474, %v475
    %v478 = vadd.f32 %v476, %v477
    %v479 = vadd.f32 %v478, %v76
    %v480 = vtanh.pop %v479
    %v481 = vmul.f32 %v113, %v435
    %v482 = vmul.f32 %v115, %v444
    %v483 = vmul.f32 %v117, %v453
    %v484 = vmul.f32 %v119, %v462
    %v485 = vadd.f32 %v481, %v482
    %v486 = vadd.f32 %v483, %v484
    %v487 = vadd.f32 %v485, %v486
    %v488 = vadd.f32 %v487, %v81
    %v489 = vtanh.pop %v488
    %v490 = vmul.f32 %v126, %v435
    %v491 = vmul.f32 %v128, %v444
    %v492 = vmul.f32 %v130, %v453
    %v493 = vmul.f32 %v132, %v462
    %v494 = vadd.f32 %v490, %v491
    %v495 = vadd.f32 %v492, %v493
    %v496 = vadd.f32 %v494, %v495
    %v497 = vadd.f32 %v496, %v86
    %v498 = vtanh.pop %v497
    %v499 = vmul.f32 %v87, %v471
    %v500 = vmul.f32 %v89, %v480
    %v501 = vmul.f32 %v91, %v489
    %v502 = vmul.f32 %v93, %v498
    %v503 = vadd.f32 %v499, %v500
    %v504 = vadd.f32 %v501, %v502
    %v505 = vadd.f32 %v503, %v504
    %v506 = vadd.f32 %v505, %v71
    %v507 = vtanh.pop %v506
    %v508 = vmul.f32 %v100, %v471
    %v509 = vmul.f32 %v102, %v480
    %v510 = vmul.f32 %v104, %v489
    %v511 = vmul.f32 %v106, %v498
    %v512 = vadd.f32 %v508, %v509
    %v513 = vadd.f32 %v510, %v511
    %v514 = vadd.f32 %v512, %v513
    %v515 = vadd.f32 %v514, %v76
    %v516 = vtanh.pop %v515
    %v517 = vmul.f32 %v113, %v471
    %v518 = vmul.f32 %v115, %v480
    %v519 = vmul.f32 %v117, %v489
    %v520 = vmul.f32 %v119, %v498
    %v521 = vadd.f32 %v517, %v518
    %v522 = vadd.f32 %v519, %v520
    %v523 = vadd.f32 %v521, %v522
    %v524 = vadd.f32 %v523, %v81
    %v525 = vtanh.pop %v524
    %v526 = vmul.f32 %v126, %v471
    %v527 = vmul.f32 %v128, %v480
    %v528 = vmul.f32 %v130, %v489
    %v529 = vmul.f32 %v132, %v498
    %v530 = vadd.f32 %v526, %v527
    %v531 = vadd.f32 %v528, %v529
    %v532 = vadd.f32 %v530, %v531
    %v533 = vadd.f32 %v532, %v86
    %v534 = vtanh.pop %v533
    %v535 = vmul.f32 %v87, %v507
    %v536 = vmul.f32 %v89, %v516
    %v537 = vmul.f32 %v91, %v525
    %v538 = vmul.f32 %v93, %v534
    %v539 = vadd.f32 %v535, %v536
    %v540 = vadd.f32 %v537, %v538
    %v541 = vadd.f32 %v539, %v540
    %v542 = vadd.f32 %v541, %v71
    %v543 = vtanh.pop %v542
    %v544 = vmul.f32 %v100, %v507
    %v545 = vmul.f32 %v102, %v516
    %v546 = vmul.f32 %v104, %v525
    %v547 = vmul.f32 %v106, %v534
    %v548 = vadd.f32 %v544, %v545
    %v549 = vadd.f32 %v546, %v547
    %v550 = vadd.f32 %v548, %v549
    %v551 = vadd.f32 %v550, %v76
    %v552 = vtanh.pop %v551
    %v553 = vmul.f32 %v113, %v507
    %v554 = vmul.f32 %v115, %v516
    %v555 = vmul.f32 %v117, %v525
    %v556 = vmul.f32 %v119, %v534
    %v557 = vadd.f32 %v553, %v554
    %v558 = vadd.f32 %v555, %v556
    %v559 = vadd.f32 %v557, %v558
    %v560 = vadd.f32 %v559, %v81
    %v561 = vtanh.pop %v560
    %v562 = vmul.f32 %v126, %v507
    %v563 = vmul.f32 %v128, %v516
    %v564 = vmul.f32 %v130, %v525
    %v565 = vmul.f32 %v132, %v534
    %v566 = vadd.f32 %v562, %v563
    %v567 = vadd.f32 %v564, %v565
    %v568 = vadd.f32 %v566, %v567
    %v569 = vadd.f32 %v568, %v86
    %v570 = vtanh.pop %v569
    %v571 = vmul.f32 %v87, %v543
    %v572 = vmul.f32 %v89, %v552
    %v573 = vmul.f32 %v91, %v561
    %v574 = vmul.f32 %v93, %v570
    %v575 = vadd.f32 %v571, %v572
    %v576 = vadd.f32 %v573, %v574
    %v577 = vadd.f32 %v575, %v576
    %v578 = vadd.f32 %v577, %v71
    %v579 = vtanh.pop %v578
    %v580 = vmul.f32 %v100, %v543
    %v581 = vmul.f32 %v102, %v552
    %v582 = vmul.f32 %v104, %v561
    %v583 = vmul.f32 %v106, %v570
    %v584 = vadd.f32 %v580, %v581
    %v585 = vadd.f32 %v582, %v583
    %v586 = vadd.f32 %v584, %v585
    %v587 = vadd.f32 %v586, %v76
    %v588 = vtanh.pop %v587
    %v589 = vmul.f32 %v113, %v543
    %v590 = vmul.f32 %v115, %v552
    %v591 = vmul.f32 %v117, %v561
    %v592 = vmul.f32 %v119, %v570
    %v593 = vadd.f32 %v589, %v590
    %v594 = vadd.f32 %v591, %v592
    %v595 = vadd.f32 %v593, %v594
    %v596 = vadd.f32 %v595, %v81
    %v597 = vtanh.pop %v596
    %v598 = vmul.f32 %v126, %v543
    %v599 = vmul.f32 %v128, %v552
    %v600 = vmul.f32 %v130, %v561
    %v601 = vmul.f32 %v132, %v570
    %v602 = vadd.f32 %v598, %v599
    %v603 = vadd.f32 %v600, %v601
    %v604 = vadd.f32 %v602, %v603
    %v605 = vadd.f32 %v604, %v86
    %v606 = vtanh.pop %v605
    %v607 = vmul.f32 %v87, %v579
    %v608 = vmul.f32 %v89, %v588
    %v609 = vmul.f32 %v91, %v597
    %v610 = vmul.f32 %v93, %v606
    %v611 = vadd.f32 %v607, %v608
    %v612 = vadd.f32 %v609, %v610
    %v613 = vadd.f32 %v611, %v612
    %v614 = vadd.f32 %v613, %v71
    %v615 = vtanh.pop %v614
    %v616 = vmul.f32 %v100, %v579
    %v617 = vmul.f32 %v102, %v588
    %v618 = vmul.f32 %v104, %v597
    %v619 = vmul.f32 %v106, %v606
    %v620 = vadd.f32 %v616, %v617
    %v621 = vadd.f32 %v618, %v619
    %v622 = vadd.f32 %v620, %v621
    %v623 = vadd.f32 %v622, %v76
    %v624 = vtanh.pop %v623
    %v625 = vmul.f32 %v113, %v579
    %v626 = vmul.f32 %v115, %v588
    %v627 = vmul.f32 %v117, %v597
    %v628 = vmul.f32 %v119, %v606
    %v629 = vadd.f32 %v625, %v626
    %v630 = vadd.f32 %v627, %v628
    %v631 = vadd.f32 %v629, %v630
    %v632 = vadd.f32 %v631, %v81
    %v633 = vtanh.pop %v632
    %v634 = vmul.f32 %v126, %v579
    %v635 = vmul.f32 %v128, %v588
    %v636 = vmul.f32 %v130, %v597
    %v637 = vmul.f32 %v132, %v606
    %v638 = vadd.f32 %v634, %v635
    %v639 = vadd.f32 %v636, %v637
    %v640 = vadd.f32 %v638, %v639
    %v641 = vadd.f32 %v640, %v86
    %v642 = vtanh.pop %v641
    %v643 = vmul.f32 %v87, %v615
    %v644 = vmul.f32 %v89, %v624
    %v645 = vmul.f32 %v91, %v633
    %v646 = vmul.f32 %v93, %v642
    %v647 = vadd.f32 %v643, %v644
    %v648 = vadd.f32 %v645, %v646
    %v649 = vadd.f32 %v647, %v648
    %v650 = vadd.f32 %v649, %v71
    %v651 = vtanh.pop %v650
    %v652 = vmul.f32 %v100, %v615
    %v653 = vmul.f32 %v102, %v624
    %v654 = vmul.f32 %v104, %v633
    %v655 = vmul.f32 %v106, %v642
    %v656 = vadd.f32 %v652, %v653
    %v657 = vadd.f32 %v654, %v655
    %v658 = vadd.f32 %v656, %v657
    %v659 = vadd.f32 %v658, %v76
    %v660 = vtanh.pop %v659
    %v661 = vmul.f32 %v113, %v615
    %v662 = vmul.f32 %v115, %v624
    %v663 = vmul.f32 %v117, %v633
    %v664 = vmul.f32 %v119, %v642
    %v665 = vadd.f32 %v661, %v662
    %v666 = vadd.f32 %v663, %v664
    %v667 = vadd.f32 %v665, %v666
    %v668 = vadd.f32 %v667, %v81
    %v669 = vtanh.pop %v668
    %v670 = vmul.f32 %v126, %v615
    %v671 = vmul.f32 %v128, %v624
    %v672 = vmul.f32 %v130, %v633
    %v673 = vmul.f32 %v132, %v642
    %v674 = vadd.f32 %v670, %v671
    %v675 = vadd.f32 %v672, %v673
    %v676 = vadd.f32 %v674, %v675
    %v677 = vadd.f32 %v676, %v86
    %v678 = vtanh.pop %v677
    %v679 = vmul.f32 %v87, %v651
    %v680 = vmul.f32 %v89, %v660
    %v681 = vmul.f32 %v91, %v669
    %v682 = vmul.f32 %v93, %v678
    %v683 = vadd.f32 %v679, %v680
    %v684 = vadd.f32 %v681, %v682
    %v685 = vadd.f32 %v683, %v684
    %v686 = vadd.f32 %v685, %v71
    %v687 = vtanh.pop %v686
    %v688 = vmul.f32 %v100, %v651
    %v689 = vmul.f32 %v102, %v660
    %v690 = vmul.f32 %v104, %v669
    %v691 = vmul.f32 %v106, %v678
    %v692 = vadd.f32 %v688, %v689
    %v693 = vadd.f32 %v690, %v691
    %v694 = vadd.f32 %v692, %v693
    %v695 = vadd.f32 %v694, %v76
    %v696 = vtanh.pop %v695
    %v697 = vmul.f32 %v113, %v651
    %v698 = vmul.f32 %v115, %v660
    %v699 = vmul.f32 %v117, %v669
    %v700 = vmul.f32 %v119, %v678
    %v701 = vadd.f32 %v697, %v698
    %v702 = vadd.f32 %v699, %v700
    %v703 = vadd.f32 %v701, %v702
    %v704 = vadd.f32 %v703, %v81
    %v705 = vtanh.pop %v704
    %v706 = vmul.f32 %v126, %v651
    %v707 = vmul.f32 %v128, %v660
    %v708 = vmul.f32 %v130, %v669
    %v709 = vmul.f32 %v132, %v678
    %v710 = vadd.f32 %v706, %v707
    %v711 = vadd.f32 %v708, %v709
    %v712 = vadd.f32 %v710, %v711
    %v713 = vadd.f32 %v712, %v86
    %v714 = vtanh.pop %v713
    %v715 = vmul.f32 %v87, %v687
    %v716 = vmul.f32 %v89, %v696
    %v717 = vmul.f32 %v91, %v705
    %v718 = vmul.f32 %v93, %v714
    %v719 = vadd.f32 %v715, %v716
    %v720 = vadd.f32 %v717, %v718
    %v721 = vadd.f32 %v719, %v720
    %v722 = vadd.f32 %v721, %v71
    %v723 = vtanh.pop %v722
    %v724 = vmul.f32 %v100, %v687
    %v725 = vmul.f32 %v102, %v696
    %v726 = vmul.f32 %v104, %v705
    %v727 = vmul.f32 %v106, %v714
    %v728 = vadd.f32 %v724, %v725
    %v729 = vadd.f32 %v726, %v727
    %v730 = vadd.f32 %v728, %v729
    %v731 = vadd.f32 %v730, %v76
    %v732 = vtanh.pop %v731
    %v733 = vmul.f32 %v113, %v687
    %v734 = vmul.f32 %v115, %v696
    %v735 = vmul.f32 %v117, %v705
    %v736 = vmul.f32 %v119, %v714
    %v737 = vadd.f32 %v733, %v734
    %v738 = vadd.f32 %v735, %v736
    %v739 = vadd.f32 %v737, %v738
    %v740 = vadd.f32 %v739, %v81
    %v741 = vtanh.pop %v740
    %v742 = vmul.f32 %v126, %v687
    %v743 = vmul.f32 %v128, %v696
    %v744 = vmul.f32 %v130, %v705
    %v745 = vmul.f32 %v132, %v714
    %v746 = vadd.f32 %v742, %v743
    %v747 = vadd.f32 %v744, %v745
    %v748 = vadd.f32 %v746, %v747
    %v749 = vadd.f32 %v748, %v86
    %v750 = vtanh.pop %v749
    %v751 = vmul.f32 %v87, %v723
    %v752 = vmul.f32 %v89, %v732
    %v753 = vmul.f32 %v91, %v741
    %v754 = vmul.f32 %v93, %v750
    %v755 = vadd.f32 %v751, %v752
    %v756 = vadd.f32 %v753, %v754
    %v757 = vadd.f32 %v755, %v756
    %v758 = vadd.f32 %v757, %v71
    %v759 = vtanh.pop %v758
    %v760 = vmul.f32 %v100, %v723
    %v761 = vmul.f32 %v102, %v732
    %v762 = vmul.f32 %v104, %v741
    %v763 = vmul.f32 %v106, %v750
    %v764 = vadd.f32 %v760, %v761
    %v765 = vadd.f32 %v762, %v763
    %v766 = vadd.f32 %v764, %v765
    %v767 = vadd.f32 %v766, %v76
    %v768 = vtanh.pop %v767
    %v769 = vmul.f32 %v113, %v723
    %v770 = vmul.f32 %v115, %v732
    %v771 = vmul.f32 %v117, %v741
    %v772 = vmul.f32 %v119, %v750
    %v773 = vadd.f32 %v769, %v770
    %v774 = vadd.f32 %v771, %v772
    %v775 = vadd.f32 %v773, %v774
    %v776 = vadd.f32 %v775, %v81
    %v777 = vtanh.pop %v776
    %v778 = vmul.f32 %v126, %v723
    %v779 = vmul.f32 %v128, %v732
    %v780 = vmul.f32 %v130, %v741
    %v781 = vmul.f32 %v132, %v750
    %v782 = vadd.f32 %v778, %v779
    %v783 = vadd.f32 %v780, %v781
    %v784 = vadd.f32 %v782, %v783
    %v785 = vadd.f32 %v784, %v86
    %v786 = vtanh.pop %v785
    %v787 = vmul.f32 %v87, %v759
    %v788 = vmul.f32 %v89, %v768
    %v789 = vmul.f32 %v91, %v777
    %v790 = vmul.f32 %v93, %v786
    %v791 = vadd.f32 %v787, %v788
    %v792 = vadd.f32 %v789, %v790
    %v793 = vadd.f32 %v791, %v792
    %v794 = vadd.f32 %v793, %v71
    %v795 = vtanh.pop %v794
    %v796 = vmul.f32 %v100, %v759
    %v797 = vmul.f32 %v102, %v768
    %v798 = vmul.f32 %v104, %v777
    %v799 = vmul.f32 %v106, %v786
    %v800 = vadd.f32 %v796, %v797
    %v801 = vadd.f32 %v798, %v799
    %v802 = vadd.f32 %v800, %v801
    %v803 = vadd.f32 %v802, %v76
    %v804 = vtanh.pop %v803
    %v805 = vmul.f32 %v113, %v759
    %v806 = vmul.f32 %v115, %v768
    %v807 = vmul.f32 %v117, %v777
    %v808 = vmul.f32 %v119, %v786
    %v809 = vadd.f32 %v805, %v806
    %v810 = vadd.f32 %v807, %v808
    %v811 = vadd.f32 %v809, %v810
    %v812 = vadd.f32 %v811, %v81
    %v813 = vtanh.pop %v812
    %v814 = vmul.f32 %v126, %v759
    %v815 = vmul.f32 %v128, %v768
    %v816 = vmul.f32 %v130, %v777
    %v817 = vmul.f32 %v132, %v786
    %v818 = vadd.f32 %v814, %v815
    %v819 = vadd.f32 %v816, %v817
    %v820 = vadd.f32 %v818, %v819
    %v821 = vadd.f32 %v820, %v86
    %v822 = vtanh.pop %v821
    %v823 = vmul.f32 %v87, %v795
    %v824 = vmul.f32 %v89, %v804
    %v825 = vmul.f32 %v91, %v813
    %v826 = vmul.f32 %v93, %v822
    %v827 = vadd.f32 %v823, %v824
    %v828 = vadd.f32 %v825, %v826
    %v829 = vadd.f32 %v827, %v828
    %v830 = vadd.f32 %v829, %v71
    %v831 = vtanh.pop %v830
    %v832 = vmul.f32 %v100, %v795
    %v833 = vmul.f32 %v102, %v804
    %v834 = vmul.f32 %v104, %v813
    %v835 = vmul.f32 %v106, %v822
    %v836 = vadd.f32 %v832, %v833
    %v837 = vadd.f32 %v834, %v835
    %v838 = vadd.f32 %v836, %v837
    %v839 = vadd.f32 %v838, %v76
    %v840 = vtanh.pop %v839
    %v841 = vmul.f32 %v113, %v795
    %v842 = vmul.f32 %v115, %v804
    %v843 = vmul.f32 %v117, %v813
    %v844 = vmul.f32 %v119, %v822
    %v845 = vadd.f32 %v841, %v842
    %v846 = vadd.f32 %v843, %v844
    %v847 = vadd.f32 %v845, %v846
    %v848 = vadd.f32 %v847, %v81
    %v849 = vtanh.pop %v848
    %v850 = vmul.f32 %v126, %v795
    %v851 = vmul.f32 %v128, %v804
    %v852 = vmul.f32 %v130, %v813
    %v853 = vmul.f32 %v132, %v822
    %v854 = vadd.f32 %v850, %v851
    %v855 = vadd.f32 %v852, %v853
    %v856 = vadd.f32 %v854, %v855
    %v857 = vadd.f32 %v856, %v86
    %v858 = vtanh.pop %v857
    %v859 = vmul.f32 %v87, %v831
    %v860 = vmul.f32 %v89, %v840
    %v861 = vmul.f32 %v91, %v849
    %v862 = vmul.f32 %v93, %v858
    %v863 = vadd.f32 %v859, %v860
    %v864 = vadd.f32 %v861, %v862
    %v865 = vadd.f32 %v863, %v864
    %v866 = vadd.f32 %v865, %v71
    %v867 = vtanh.pop %v866
    %v868 = vmul.f32 %v100, %v831
    %v869 = vmul.f32 %v102, %v840
    %v870 = vmul.f32 %v104, %v849
    %v871 = vmul.f32 %v106, %v858
    %v872 = vadd.f32 %v868, %v869
    %v873 = vadd.f32 %v870, %v871
    %v874 = vadd.f32 %v872, %v873
    %v875 = vadd.f32 %v874, %v76
    %v876 = vtanh.pop %v875
    %v877 = vmul.f32 %v113, %v831
    %v878 = vmul.f32 %v115, %v840
    %v879 = vmul.f32 %v117, %v849
    %v880 = vmul.f32 %v119, %v858
    %v881 = vadd.f32 %v877, %v878
    %v882 = vadd.f32 %v879, %v880
    %v883 = vadd.f32 %v881, %v882
    %v884 = vadd.f32 %v883, %v81
    %v885 = vtanh.pop %v884
    %v886 = vmul.f32 %v126, %v831
    %v887 = vmul.f32 %v128, %v840
    %v888 = vmul.f32 %v130, %v849
    %v889 = vmul.f32 %v132, %v858
    %v890 = vadd.f32 %v886, %v887
    %v891 = vadd.f32 %v888, %v889
    %v892 = vadd.f32 %v890, %v891
    %v893 = vadd.f32 %v892, %v86
    %v894 = vtanh.pop %v893
    %v895 = vmul.f32 %v87, %v867
    %v896 = vmul.f32 %v89, %v876
    %v897 = vmul.f32 %v91, %v885
    %v898 = vmul.f32 %v93, %v894
    %v899 = vadd.f32 %v895, %v896
    %v900 = vadd.f32 %v897, %v898
    %v901 = vadd.f32 %v899, %v900
    %v902 = vadd.f32 %v901, %v71
    %v903 = vtanh.pop %v902
    %v904 = vmul.f32 %v100, %v867
    %v905 = vmul.f32 %v102, %v876
    %v906 = vmul.f32 %v104, %v885
    %v907 = vmul.f32 %v106, %v894
    %v908 = vadd.f32 %v904, %v905
    %v909 = vadd.f32 %v906, %v907
    %v910 = vadd.f32 %v908, %v909
    %v911 = vadd.f32 %v910, %v76
    %v912 = vtanh.pop %v911
    %v913 = vmul.f32 %v113, %v867
    %v914 = vmul.f32 %v115, %v876
    %v915 = vmul.f32 %v117, %v885
    %v916 = vmul.f32 %v119, %v894
    %v917 = vadd.f32 %v913, %v914
    %v918 = vadd.f32 %v915, %v916
    %v919 = vadd.f32 %v917, %v918
    %v920 = vadd.f32 %v919, %v81
    %v921 = vtanh.pop %v920
    %v922 = vmul.f32 %v126, %v867
    %v923 = vmul.f32 %v128, %v876
    %v924 = vmul.f32 %v130, %v885
    %v925 = vmul.f32 %v132, %v894
    %v926 = vadd.f32 %v922, %v923
    %v927 = vadd.f32 %v924, %v925
    %v928 = vadd.f32 %v926, %v927
    %v929 = vadd.f32 %v928, %v86
    %v930 = vtanh.pop %v929
    %v931 = vmul.f32 %v87, %v903
    %v932 = vmul.f32 %v89, %v912
    %v933 = vmul.f32 %v91, %v921
    %v934 = vmul.f32 %v93, %v930
    %v935 = vadd.f32 %v931, %v932
    %v936 = vadd.f32 %v933, %v934
    %v937 = vadd.f32 %v935, %v936
    %v938 = vadd.f32 %v937, %v71
    %v939 = vtanh.pop %v938
    %v940 = vmul.f32 %v100, %v903
    %v941 = vmul.f32 %v102, %v912
    %v942 = vmul.f32 %v104, %v921
    %v943 = vmul.f32 %v106, %v930
    %v944 = vadd.f32 %v940, %v941
    %v945 = vadd.f32 %v942, %v943
    %v946 = vadd.f32 %v944, %v945
    %v947 = vadd.f32 %v946, %v76
    %v948 = vtanh.pop %v947
    %v949 = vmul.f32 %v113, %v903
    %v950 = vmul.f32 %v115, %v912
    %v951 = vmul.f32 %v117, %v921
    %v952 = vmul.f32 %v119, %v930
    %v953 = vadd.f32 %v949, %v950
    %v954 = vadd.f32 %v951, %v952
    %v955 = vadd.f32 %v953, %v954
    %v956 = vadd.f32 %v955, %v81
    %v957 = vtanh.pop %v956
    %v958 = vmul.f32 %v126, %v903
    %v959 = vmul.f32 %v128, %v912
    %v960 = vmul.f32 %v130, %v921
    %v961 = vmul.f32 %v132, %v930
    %v962 = vadd.f32 %v958, %v959
    %v963 = vadd.f32 %v960, %v961
    %v964 = vadd.f32 %v962, %v963
    %v965 = vadd.f32 %v964, %v86
    %v966 = vtanh.pop %v965
    %v967 = vmul.f32 %v87, %v939
    %v968 = vmul.f32 %v89, %v948
    %v969 = vmul.f32 %v91, %v957
    %v970 = vmul.f32 %v93, %v966
    %v971 = vadd.f32 %v967, %v968
    %v972 = vadd.f32 %v969, %v970
    %v973 = vadd.f32 %v971, %v972
    %v974 = vadd.f32 %v973, %v71
    %v975 = vtanh.pop %v974
    %v976 = vmul.f32 %v100, %v939
    %v977 = vmul.f32 %v102, %v948
    %v978 = vmul.f32 %v104, %v957
    %v979 = vmul.f32 %v106, %v966
    %v980 = vadd.f32 %v976, %v977
    %v981 = vadd.f32 %v978, %v979
    %v982 = vadd.f32 %v980, %v981
    %v983 = vadd.f32 %v982, %v76
    %v984 = vtanh.pop %v983
    %v985 = vmul.f32 %v113, %v939
    %v986 = vmul.f32 %v115, %v948
    %v987 = vmul.f32 %v117, %v957
    %v988 = vmul.f32 %v119, %v966
    %v989 = vadd.f32 %v985, %v986
    %v990 = vadd.f32 %v987, %v988
    %v991 = vadd.f32 %v989, %v990
    %v992 = vadd.f32 %v991, %v81
    %v993 = vtanh.pop %v992
    %v994 = vmul.f32 %v126, %v939
    %v995 = vmul.f32 %v128, %v948
    %v996 = vmul.f32 %v130, %v957
    %v997 = vmul.f32 %v132, %v966
    %v998 = vadd.f32 %v994, %v995
    %v999 = vadd.f32 %v996, %v997
    %v1000 = vadd.f32 %v998, %v999
    %v1001 = vadd.f32 %v1000, %v86
    %v1002 = vtanh.pop %v1001
    %v1003 = vmul.f32 %v87, %v975
    %v1004 = vmul.f32 %v89, %v984
    %v1005 = vmul.f32 %v91, %v993
    %v1006 = vmul.f32 %v93, %v1002
    %v1007 = vadd.f32 %v1003, %v1004
    %v1008 = vadd.f32 %v1005, %v1006
    %v1009 = vadd.f32 %v1007, %v1008
    %v1010 = vadd.f32 %v1009, %v71
    %v1011 = vtanh.pop %v1010
    %v1012 = vmul.f32 %v100, %v975
    %v1013 = vmul.f32 %v102, %v984
    %v1014 = vmul.f32 %v104, %v993
    %v1015 = vmul.f32 %v106, %v1002
    %v1016 = vadd.f32 %v1012, %v1013
    %v1017 = vadd.f32 %v1014, %v1015
    %v1018 = vadd.f32 %v1016, %v1017
    %v1019 = vadd.f32 %v1018, %v76
    %v1020 = vtanh.pop %v1019
    %v1021 = vmul.f32 %v113, %v975
    %v1022 = vmul.f32 %v115, %v984
    %v1023 = vmul.f32 %v117, %v993
    %v1024 = vmul.f32 %v119, %v1002
    %v1025 = vadd.f32 %v1021, %v1022
    %v1026 = vadd.f32 %v1023, %v1024
    %v1027 = vadd.f32 %v1025, %v1026
    %v1028 = vadd.f32 %v1027, %v81
    %v1029 = vtanh.pop %v1028
    %v1030 = vmul.f32 %v126, %v975
    %v1031 = vmul.f32 %v128, %v984
    %v1032 = vmul.f32 %v130, %v993
    %v1033 = vmul.f32 %v132, %v1002
    %v1034 = vadd.f32 %v1030, %v1031
    %v1035 = vadd.f32 %v1032, %v1033
    %v1036 = vadd.f32 %v1034, %v1035
    %v1037 = vadd.f32 %v1036, %v86
    %v1038 = vtanh.pop %v1037
    %v1039 = vmul.f32 %v87, %v1011
    %v1040 = vmul.f32 %v89, %v1020
    %v1041 = vmul.f32 %v91, %v1029
    %v1042 = vmul.f32 %v93, %v1038
    %v1043 = vadd.f32 %v1039, %v1040
    %v1044 = vadd.f32 %v1041, %v1042
    %v1045 = vadd.f32 %v1043, %v1044
    %v1046 = vadd.f32 %v1045, %v71
    %v1047 = vtanh.pop %v1046
    %v1048 = vmul.f32 %v100, %v1011
    %v1049 = vmul.f32 %v102, %v1020
    %v1050 = vmul.f32 %v104, %v1029
    %v1051 = vmul.f32 %v106, %v1038
    %v1052 = vadd.f32 %v1048, %v1049
    %v1053 = vadd.f32 %v1050, %v1051
    %v1054 = vadd.f32 %v1052, %v1053
    %v1055 = vadd.f32 %v1054, %v76
    %v1056 = vtanh.pop %v1055
    %v1057 = vmul.f32 %v113, %v1011
    %v1058 = vmul.f32 %v115, %v1020
    %v1059 = vmul.f32 %v117, %v1029
    %v1060 = vmul.f32 %v119, %v1038
    %v1061 = vadd.f32 %v1057, %v1058
    %v1062 = vadd.f32 %v1059, %v1060
    %v1063 = vadd.f32 %v1061, %v1062
    %v1064 = vadd.f32 %v1063, %v81
    %v1065 = vtanh.pop %v1064
    %v1066 = vmul.f32 %v126, %v1011
    %v1067 = vmul.f32 %v128, %v1020
    %v1068 = vmul.f32 %v130, %v1029
    %v1069 = vmul.f32 %v132, %v1038
    %v1070 = vadd.f32 %v1066, %v1067
    %v1071 = vadd.f32 %v1068, %v1069
    %v1072 = vadd.f32 %v1070, %v1071
    %v1073 = vadd.f32 %v1072, %v86
    %v1074 = vtanh.pop %v1073
    %v1075 = vmul.f32 %v87, %v1047
    %v1076 = vmul.f32 %v89, %v1056
    %v1077 = vmul.f32 %v91, %v1065
    %v1078 = vmul.f32 %v93, %v1074
    %v1079 = vadd.f32 %v1075, %v1076
    %v1080 = vadd.f32 %v1077, %v1078
    %v1081 = vadd.f32 %v1079, %v1080
    %v1082 = vadd.f32 %v1081, %v71
    %v1083 = vtanh.pop %v1082
    %v1084 = vmul.f32 %v100, %v1047
    %v1085 = vmul.f32 %v102, %v1056
    %v1086 = vmul.f32 %v104, %v1065
    %v1087 = vmul.f32 %v106, %v1074
    %v1088 = vadd.f32 %v1084, %v1085
    %v1089 = vadd.f32 %v1086, %v1087
    %v1090 = vadd.f32 %v1088, %v1089
    %v1091 = vadd.f32 %v1090, %v76
    %v1092 = vtanh.pop %v1091
    %v1093 = vmul.f32 %v113, %v1047
    %v1094 = vmul.f32 %v115, %v1056
    %v1095 = vmul.f32 %v117, %v1065
    %v1096 = vmul.f32 %v119, %v1074
    %v1097 = vadd.f32 %v1093, %v1094
    %v1098 = vadd.f32 %v1095, %v1096
    %v1099 = vadd.f32 %v1097, %v1098
    %v1100 = vadd.f32 %v1099, %v81
    %v1101 = vtanh.pop %v1100
    %v1102 = vmul.f32 %v126, %v1047
    %v1103 = vmul.f32 %v128, %v1056
    %v1104 = vmul.f32 %v130, %v1065
    %v1105 = vmul.f32 %v132, %v1074
    %v1106 = vadd.f32 %v1102, %v1103
    %v1107 = vadd.f32 %v1104, %v1105
    %v1108 = vadd.f32 %v1106, %v1107
    %v1109 = vadd.f32 %v1108, %v86
    %v1110 = vtanh.pop %v1109
    %v1111 = vmul.f32 %v87, %v1083
    %v1112 = vmul.f32 %v89, %v1092
    %v1113 = vmul.f32 %v91, %v1101
    %v1114 = vmul.f32 %v93, %v1110
    %v1115 = vadd.f32 %v1111, %v1112
    %v1116 = vadd.f32 %v1113, %v1114
    %v1117 = vadd.f32 %v1115, %v1116
    %v1118 = vadd.f32 %v1117, %v71
    %v1119 = vtanh.pop %v1118
    %v1120 = vmul.f32 %v100, %v1083
    %v1121 = vmul.f32 %v102, %v1092
    %v1122 = vmul.f32 %v104, %v1101
    %v1123 = vmul.f32 %v106, %v1110
    %v1124 = vadd.f32 %v1120, %v1121
    %v1125 = vadd.f32 %v1122, %v1123
    %v1126 = vadd.f32 %v1124, %v1125
    %v1127 = vadd.f32 %v1126, %v76
    %v1128 = vtanh.pop %v1127
    %v1129 = vmul.f32 %v113, %v1083
    %v1130 = vmul.f32 %v115, %v1092
    %v1131 = vmul.f32 %v117, %v1101
    %v1132 = vmul.f32 %v119, %v1110
    %v1133 = vadd.f32 %v1129, %v1130
    %v1134 = vadd.f32 %v1131, %v1132
    %v1135 = vadd.f32 %v1133, %v1134
    %v1136 = vadd.f32 %v1135, %v81
    %v1137 = vtanh.pop %v1136
    %v1138 = vmul.f32 %v126, %v1083
    %v1139 = vmul.f32 %v128, %v1092
    %v1140 = vmul.f32 %v130, %v1101
    %v1141 = vmul.f32 %v132, %v1110
    %v1142 = vadd.f32 %v1138, %v1139
    %v1143 = vadd.f32 %v1140, %v1141
    %v1144 = vadd.f32 %v1142, %v1143
    %v1145 = vadd.f32 %v1144, %v86
    %v1146 = vtanh.pop %v1145
    %v1147 = vmul.f32 %v87, %v1119
    %v1148 = vmul.f32 %v89, %v1128
    %v1149 = vmul.f32 %v91, %v1137
    %v1150 = vmul.f32 %v93, %v1146
    %v1151 = vadd.f32 %v1147, %v1148
    %v1152 = vadd.f32 %v1149, %v1150
    %v1153 = vadd.f32 %v1151, %v1152
    %v1154 = vadd.f32 %v1153, %v71
    %v1155 = vtanh.pop %v1154
    %v1156 = vmul.f32 %v100, %v1119
    %v1157 = vmul.f32 %v102, %v1128
    %v1158 = vmul.f32 %v104, %v1137
    %v1159 = vmul.f32 %v106, %v1146
    %v1160 = vadd.f32 %v1156, %v1157
    %v1161 = vadd.f32 %v1158, %v1159
    %v1162 = vadd.f32 %v1160, %v1161
    %v1163 = vadd.f32 %v1162, %v76
    %v1164 = vtanh.pop %v1163
    %v1165 = vmul.f32 %v113, %v1119
    %v1166 = vmul.f32 %v115, %v1128
    %v1167 = vmul.f32 %v117, %v1137
    %v1168 = vmul.f32 %v119, %v1146
    %v1169 = vadd.f32 %v1165, %v1166
    %v1170 = vadd.f32 %v1167, %v1168
    %v1171 = vadd.f32 %v1169, %v1170
    %v1172 = vadd.f32 %v1171, %v81
    %v1173 = vtanh.pop %v1172
    %v1174 = vmul.f32 %v126, %v1119
    %v1175 = vmul.f32 %v128, %v1128
    %v1176 = vmul.f32 %v130, %v1137
    %v1177 = vmul.f32 %v132, %v1146
    %v1178 = vadd.f32 %v1174, %v1175
    %v1179 = vadd.f32 %v1176, %v1177
    %v1180 = vadd.f32 %v1178, %v1179
    %v1181 = vadd.f32 %v1180, %v86
    %v1182 = vtanh.pop %v1181
    %1183 = vst [vmem:[#allocation9] sm:$0xff] %v1155
    %s1184 = scalar_lea.vmem [#allocation9], 8
    %1185 = vst [vmem:[%s1184] sm:$0xff] %v1164
    %s1186 = scalar_lea.vmem [#allocation9], 16
    %1187 = vst [vmem:[%s1186] sm:$0xff] %v1173
    %s1188 = scalar_lea.vmem [#allocation9], 24
    %1189 = vst [vmem:[%s1188] sm:$0xff] %v1182
    // Predicated region
    $region26: #{tpu_custom_call.1} parent=1 // pred_check
      _
    $region27: #{tpu_custom_call.1} parent=1 // pred_check_branch
      %1191 = sbr.rel (0) target = $region29
    $region28: #{tpu_custom_call.1} parent=1 // pred_region
      %s1193 = ssub.s32 512, 512
      %1194 = vsyncadd [#allocation4], %s1193
      %s1195 = sshll.u32 [#allocation9], 4
      %s1196 = int_to_ptr.vmem [resolvable:$true] %s1195
      %1201 = dma.vmem_to_hbm [thread:$0]  %s1196, 512, %s3, [#allocation4], 128, 128, 8
    $region29: #{tpu_custom_call.1} parent=1 // pred_fallthru
      _
    // Predicated region
    $region30: #{tpu_custom_call.1} parent=1 // pred_check
      _
    $region31: #{tpu_custom_call.1} parent=1 // pred_check_branch
      %1203 = sbr.rel (0) target = $region33
    $region32: #{tpu_custom_call.1} parent=1 // pred_region
      %1204 = dma.done [#allocation4], 512
    $region33: #{tpu_custom_call.1} parent=1 // pred_fallthru
      _
    %1205 = vsyncpa [#allocation3], 1
    %1206 = vsyncpa [#allocation4], 1
    %1207 = vsyncpa [#allocation5], 1
    %1208 = vsyncpa [#allocation6], 1

</llo_original>
